<compile_context>
chip_gen: v6e
topology: v6e:2x2x1
jax: 0.10.0
libtpu: 0.0.40
codegen_flags: <defaults>
</compile_context>

<pallas_src>
import functools
import math

import jax
import jax.numpy as jnp
from jax.experimental import pallas as pl
from jax.experimental.pallas import tpu as pltpu

LN_EPS = 1e-5
KV_TILE = 512   # online-softmax K/V tile (1 tile at the toy sizes below)


# --------------------------------------------------------------------------
# Fused decoder-layer kernel: one grid step == (batch element, query tile)
# --------------------------------------------------------------------------
def _decoder_layer_kernel(xq_ref, xfull_ref, enc_ref,
                          wq_ref, wkv_ref, wo_ref, w1_ref, w2_ref,
                          bkv_ref, b1_ref, vecs_ref, o_ref,
                          *, num_heads, kv_tile):
    # wq_ref:   (2, H, H)   bf16   [0]=self Q proj, [1]=cross Q proj
    # wkv_ref:  (2, H, 2H)  bf16   fused K|V projections
    # wo_ref:   (2, H, H)   bf16   out-projections (head-sum fused into matmul)
    # bkv_ref:  (2, 1, 2H)  f32    fused K|V biases
    # b1_ref:   (1, 4H)     f32    FFN fc1 bias
    # vecs_ref: (7, 1, H)   f32    [bq_self, bq_cross, bo_self, bo_cross,
    #                               b2, gamma, beta]
    nh = num_heads
    H = wq_ref.shape[-1]
    dh = H // nh
    scale = 1.0 / math.sqrt(dh)

    def split_heads(a):   # (s, H) -> (nh, s, dh); lane slices, no reshape relayout
        return jnp.stack([a[:, h * dh:(h + 1) * dh] for h in range(nh)], axis=0)

    def merge_heads(a):   # (nh, s, dh) -> (s, H)
        return jnp.concatenate([a[h] for h in range(nh)], axis=-1)

    def mha(q_in_bf16, kv_in_bf16, idx, bq_row, bo_row):
        # --- full-width projections (MXU N = H and 2H) -----------------------
        q = (jnp.dot(q_in_bf16, wq_ref[idx],
                     preferred_element_type=jnp.float32)
             + vecs_ref[bq_row]) * scale                              # (tq, H) f32
        kv = jnp.dot(kv_in_bf16, wkv_ref[idx],
                     preferred_element_type=jnp.float32) + bkv_ref[idx]  # (skv, 2H)
        tq = q.shape[0]
        s_kv = kv.shape[0]

        q_h = split_heads(q.astype(jnp.bfloat16))                     # (nh, tq, dh)
        k_h = split_heads(kv[:, :H].astype(jnp.bfloat16))             # (nh, skv, dh)
        v_h = split_heads(kv[:, H:].astype(jnp.bfloat16))             # (nh, skv, dh)

        # --- flash-style online softmax over K/V tiles ------------------------
        # Bounds live score state to (nh, tq, kv_tile); one tile at small S.
        # TODO(synk): switch the static Python loop to lax.fori_loop (or a grid
        # axis) to bound live ranges for very long sequences.
        m = jnp.full((nh, tq, 1), -jnp.inf, jnp.float32)
        l = jnp.zeros((nh, tq, 1), jnp.float32)
        acc = jnp.zeros((nh, tq, dh), jnp.float32)
        n_tiles = pl.cdiv(s_kv, kv_tile)
        for t in range(n_tiles):
            lo = t * kv_tile
            hi = min(lo + kv_tile, s_kv)
            kt = k_h[:, lo:hi, :]
            vt = v_h[:, lo:hi, :]
            s = jnp.einsum('nqd,nkd->nqk', q_h, kt,
                           preferred_element_type=jnp.float32)        # (nh,tq,tk)
            m_new = jnp.maximum(m, jnp.max(s, axis=-1, keepdims=True))
            alpha = jnp.exp(m - m_new)
            p = jnp.exp(s - m_new)
            l = alpha * l + jnp.sum(p, axis=-1, keepdims=True)
            acc = alpha * acc + jnp.einsum('nqk,nkd->nqd',
                                           p.astype(jnp.bfloat16), vt,
                                           preferred_element_type=jnp.float32)
            m = m_new

        # Normalize AFTER the PV matmul (on (nh,tq,dh), not the score matrix).
        ctx = acc * pl.reciprocal(l, approx=True)                     # (nh,tq,dh) f32

        # --- out-projection with fused head reduction --------------------------
        ctx2d = merge_heads(ctx).astype(jnp.bfloat16)                 # (tq, H) bf16
        return (jnp.dot(ctx2d, wo_ref[idx],
                        preferred_element_type=jnp.float32)
                + vecs_ref[bo_row])                                   # (tq, H) f32

    xq = xq_ref[0].astype(jnp.bfloat16)        # (tq, H)     query tile
    xfull = xfull_ref[0].astype(jnp.bfloat16)  # (S, H)      full x for self K/V
    enc = enc_ref[0].astype(jnp.bfloat16)      # (S_enc, H)

    # ---- self attention: x = attended_self (no residual in the reference) ----
    x1 = mha(xq, xfull, 0, bq_row=0, bo_row=2)

    # ---- cross attention: x2 = x + attended_encoder ---------------------------
    x2 = x1 + mha(x1.astype(jnp.bfloat16), enc, 1, bq_row=1, bo_row=3)

    # ---- FeedForward: fc1 -> relu -> (dropout=id) -> fc2 -> (dropout=id) ------
    # TODO(synk): K-tile the (H,4H)/(4H,H) matmuls for realistic H on v7x.
    h = jnp.dot(x2.astype(jnp.bfloat16), w1_ref[...],
                preferred_element_type=jnp.float32) + b1_ref[...]
    h = jnp.maximum(h, 0.0)
    y = jnp.dot(h.astype(jnp.bfloat16), w2_ref[...],
                preferred_element_type=jnp.float32) + vecs_ref[4]

    # LayerNorm(y + y) -- reproduces the reference's `layer_norm(x + x)`.
    z = y + y
    mu = jnp.mean(z, axis=-1, keepdims=True)
    zc = z - mu
    var = jnp.mean(zc * zc, axis=-1, keepdims=True)
    norm = zc * jax.lax.rsqrt(var + LN_EPS)
    o_ref[0] = (norm * vecs_ref[5] + vecs_ref[6]).astype(o_ref.dtype)


# --------------------------------------------------------------------------
# Wrapper: pack lane-dense weights, single pallas_call, (B, S//tq) grid
# --------------------------------------------------------------------------
def decoder_layer(x, encoder_output, params, *, num_heads):
    B, S, H = x.shape
    S_enc = encoder_output.shape[1]
    dh = H // num_heads
    assert dh * num_heads == H
    H4 = 4 * H

    tq = S if S <= 256 else 256
    assert S % tq == 0, "sequence length must be divisible by the query tile"

    wq_s, bq_s, wk_s, bk_s, wv_s, bv_s, wo_s, bo_s = params["self_attn"]
    wq_c, bq_c, wk_c, bk_c, wv_c, bv_c, wo_c, bo_c = params["enc_attn"]
    w1, b1, w2, b2, gamma, beta = params["ffn"]

    # Lane-dense packing (last dim = H / 2H / 4H), weights in bf16 once.
    wq = jnp.stack([wq_s, wq_c]).astype(jnp.bfloat16)                 # (2, H, H)
    wkv = jnp.stack([jnp.concatenate([wk_s, wv_s], axis=1),
                     jnp.concatenate([wk_c, wv_c], axis=1)]
                    ).astype(jnp.bfloat16)                            # (2, H, 2H)
    wo = jnp.stack([wo_s, wo_c]).astype(jnp.bfloat16)                 # (2, H, H)
    bkv = jnp.stack([jnp.concatenate([bk_s, bv_s]),
                     jnp.concatenate([bk_c, bv_c])])[:, None, :]      # (2, 1, 2H)
    vecs = jnp.stack([bq_s, bq_c, bo_s, bo_c,
                      b2, gamma, beta])[:, None, :]                   # (7, 1, H)
    w1b = w1.astype(jnp.bfloat16)                                     # (H, 4H)
    w2b = w2.astype(jnp.bfloat16)                                     # (4H, H)
    b1r = b1.reshape(1, H4)

    flops = int(B * (8 * S * H * H            # self-attn q/kv/out projections
                     + 4 * S * S * H          # self-attn scores + context
                     + 4 * S * H * H          # cross-attn q/out projections
                     + 4 * S_enc * H * H      # cross-attn k/v projections
                     + 4 * S * S_enc * H      # cross-attn scores + context
                     + 16 * S * H * H))       # FFN fc1 + fc2
    transcendentals = int(B * num_heads * S * (S + S_enc))
    bytes_accessed = int(2 * (wq.size + wkv.size + wo.size + w1b.size + w2b.size)
                         + 4 * (bkv.size + vecs.size + b1r.size)
                         + 4 * (2 * B * S * H + B * S_enc * H))

    full = lambda shape: pl.BlockSpec(shape, lambda b, qi: (0,) * len(shape))
    kernel = functools.partial(_decoder_layer_kernel,
                               num_heads=num_heads, kv_tile=KV_TILE)

    return pl.pallas_call(
        kernel,
        out_shape=jax.ShapeDtypeStruct((B, S, H), x.dtype),
        grid_spec=pltpu.PrefetchScalarGridSpec(
            num_scalar_prefetch=0,
            grid=(B, S // tq),
            in_specs=[
                pl.BlockSpec((1, tq, H), lambda b, qi: (b, qi, 0)),      # x (q tile)
                pl.BlockSpec((1, S, H), lambda b, qi: (b, 0, 0)),        # x (full, self K/V)
                pl.BlockSpec((1, S_enc, H), lambda b, qi: (b, 0, 0)),    # encoder_output
                full(wq.shape),
                full(wkv.shape),
                full(wo.shape),
                full((H, H4)),
                full((H4, H)),
                full(bkv.shape),
                full((1, H4)),
                full(vecs.shape),
            ],
            out_specs=pl.BlockSpec((1, tq, H), lambda b, qi: (b, qi, 0)),
        ),
        compiler_params=pltpu.CompilerParams(
            dimension_semantics=("parallel", "parallel")),
        cost_estimate=pl.CostEstimate(flops=flops,
                                      transcendentals=transcendentals,
                                      bytes_accessed=bytes_accessed),
    )(x, x, encoder_output, wq, wkv, wo, w1b, w2b, bkv, b1r, vecs)


# --------------------------------------------------------------------------
# Deterministic parameter construction
# --------------------------------------------------------------------------
def _init_mha_params(key, hidden):
    ks = jax.random.split(key, 8)

    def lin(kw, kb):
        return (jax.random.normal(kw, (hidden, hidden), jnp.float32) * 0.05,
                jax.random.normal(kb, (hidden,), jnp.float32) * 0.05)

    wq, bq = lin(ks[0], ks[1])
    wk, bk = lin(ks[2], ks[3])
    wv, bv = lin(ks[4], ks[5])
    wo, bo = lin(ks[6], ks[7])
    return (wq, bq, wk, bk, wv, bv, wo, bo)


def _init_ffn_params(key, hidden):
    k1, k2, k3, k4 = jax.random.split(key, 4)
    w1 = jax.random.normal(k1, (hidden, 4 * hidden), jnp.float32) * 0.05
    b1 = jax.random.normal(k3, (4 * hidden,), jnp.float32) * 0.05
    w2 = jax.random.normal(k2, (4 * hidden, hidden), jnp.float32) * 0.05
    b2 = jax.random.normal(k4, (hidden,), jnp.float32) * 0.05
    gamma = jnp.ones((hidden,), jnp.float32)
    beta = jnp.zeros((hidden,), jnp.float32)
    return (w1, b1, w2, b2, gamma, beta)


if __name__ == "__main__":
    B, S, S_ENC, HIDDEN, NUM_HEADS = 2, 8, 8, 32, 4

    root = jax.random.PRNGKey(0)
    k_x, k_enc, k_sa, k_ea, k_ffn = jax.random.split(root, 5)

    x = jax.random.normal(k_x, (B, S, HIDDEN), jnp.float32)
    encoder_output = jax.random.normal(k_enc, (B, S_ENC, HIDDEN), jnp.float32)

    params = {
        "self_attn": _init_mha_params(k_sa, HIDDEN),
        "enc_attn": _init_mha_params(k_ea, HIDDEN),
        "ffn": _init_ffn_params(k_ffn, HIDDEN),
    }

    out = decoder_layer(x, encoder_output, params, num_heads=NUM_HEADS)
    jax.block_until_ready(out)
    assert out.shape == (B, S, HIDDEN)
    assert bool(jnp.all(jnp.isfinite(out)))
    print("KERNEL_OK")
</pallas_src>

<mosaic_0001>
module attributes {stable_mosaic.version = 11 : i64} {
  func.func @_decoder_layer_kernel(%arg0: i32, %arg1: i32, %arg2: memref<1x8x32xf32, #tpu.memory_space<vmem>>, %arg3: memref<1x8x32xf32, #tpu.memory_space<vmem>>, %arg4: memref<1x8x32xf32, #tpu.memory_space<vmem>>, %arg5: memref<2x32x32xbf16, #tpu.memory_space<vmem>>, %arg6: memref<2x32x64xbf16, #tpu.memory_space<vmem>>, %arg7: memref<2x32x32xbf16, #tpu.memory_space<vmem>>, %arg8: memref<32x128xbf16, #tpu.memory_space<vmem>>, %arg9: memref<128x32xbf16, #tpu.memory_space<vmem>>, %arg10: memref<2x1x64xf32, #tpu.memory_space<vmem>>, %arg11: memref<1x128xf32, #tpu.memory_space<vmem>>, %arg12: memref<7x1x32xf32, #tpu.memory_space<vmem>>, %arg13: memref<1x8x32xf32, #tpu.memory_space<vmem>>) attributes {dimension_semantics = [#tpu.dimension_semantics<parallel>, #tpu.dimension_semantics<parallel>], iteration_bounds = array<i64: 2, 1>, scalar_prefetch = 0 : i64, scratch_operands = 0 : i64, tpu.core_type = #tpu.core_type<tc>, window_params = [{transform_indices = @transform_0, window_bounds = array<i64: 1, 8, 32>}, {transform_indices = @transform_1, window_bounds = array<i64: 1, 8, 32>}, {transform_indices = @transform_2, window_bounds = array<i64: 1, 8, 32>}, {pipeline_mode = #tpu.pipeline_mode<synchronous>, transform_indices = @transform_3, window_bounds = array<i64: 2, 32, 32>}, {pipeline_mode = #tpu.pipeline_mode<synchronous>, transform_indices = @transform_4, window_bounds = array<i64: 2, 32, 64>}, {pipeline_mode = #tpu.pipeline_mode<synchronous>, transform_indices = @transform_5, window_bounds = array<i64: 2, 32, 32>}, {pipeline_mode = #tpu.pipeline_mode<synchronous>, transform_indices = @transform_6, window_bounds = array<i64: 32, 128>}, {pipeline_mode = #tpu.pipeline_mode<synchronous>, transform_indices = @transform_7, window_bounds = array<i64: 128, 32>}, {pipeline_mode = #tpu.pipeline_mode<synchronous>, transform_indices = @transform_8, window_bounds = array<i64: 2, 1, 64>}, {pipeline_mode = #tpu.pipeline_mode<synchronous>, transform_indices = @transform_9, window_bounds = array<i64: 1, 128>}, {pipeline_mode = #tpu.pipeline_mode<synchronous>, transform_indices = @transform_10, window_bounds = array<i64: 7, 1, 32>}, {transform_indices = @transform_11, window_bounds = array<i64: 1, 8, 32>}]} {
    %c0 = arith.constant 0 : index
    %c0_0 = arith.constant 0 : index
    %c0_1 = arith.constant 0 : index
    %0 = vector.load %arg2[%c0, %c0_0, %c0_1] : memref<1x8x32xf32, #tpu.memory_space<vmem>>, vector<1x8x32xf32>
    %1 = vector.shape_cast %0 : vector<1x8x32xf32> to vector<8x32xf32>
    %2 = arith.truncf %1 : vector<8x32xf32> to vector<8x32xbf16>
    %c0_2 = arith.constant 0 : index
    %c0_3 = arith.constant 0 : index
    %c0_4 = arith.constant 0 : index
    %3 = vector.load %arg3[%c0_2, %c0_3, %c0_4] : memref<1x8x32xf32, #tpu.memory_space<vmem>>, vector<1x8x32xf32>
    %4 = vector.shape_cast %3 : vector<1x8x32xf32> to vector<8x32xf32>
    %5 = arith.truncf %4 : vector<8x32xf32> to vector<8x32xbf16>
    %c0_5 = arith.constant 0 : index
    %c0_6 = arith.constant 0 : index
    %c0_7 = arith.constant 0 : index
    %6 = vector.load %arg4[%c0_5, %c0_6, %c0_7] : memref<1x8x32xf32, #tpu.memory_space<vmem>>, vector<1x8x32xf32>
    %7 = vector.shape_cast %6 : vector<1x8x32xf32> to vector<8x32xf32>
    %8 = arith.truncf %7 : vector<8x32xf32> to vector<8x32xbf16>
    %c0_8 = arith.constant 0 : index
    %c0_9 = arith.constant 0 : index
    %c0_10 = arith.constant 0 : index
    %9 = vector.load %arg5[%c0_8, %c0_9, %c0_10] : memref<2x32x32xbf16, #tpu.memory_space<vmem>>, vector<1x32x32xbf16>
    %10 = vector.shape_cast %9 : vector<1x32x32xbf16> to vector<32x32xbf16>
    %cst = arith.constant dense<0.000000e+00> : vector<8x32xf32>
    %11 = tpu.matmul %2, %10, %cst {dimension_numbers = #tpu.dot_dimension_numbers<[1], [0], [0], [1], [0, 0, 1, 1], [], []>} : vector<8x32xbf16>, vector<32x32xbf16>, vector<8x32xf32> -> vector<8x32xf32>
    %c0_11 = arith.constant 0 : index
    %c0_12 = arith.constant 0 : index
    %c0_13 = arith.constant 0 : index
    %12 = vector.load %arg12[%c0_11, %c0_12, %c0_13] : memref<7x1x32xf32, #tpu.memory_space<vmem>>, vector<1x1x32xf32>
    %13 = vector.shape_cast %12 : vector<1x1x32xf32> to vector<1x32xf32>
    %14 = vector.broadcast %13 : vector<1x32xf32> to vector<8x32xf32>
    %15 = arith.addf %11, %14 : vector<8x32xf32>
    %cst_14 = arith.constant 0.353553385 : f32
    %16 = vector.broadcast %cst_14 : f32 to vector<8x32xf32>
    %17 = arith.mulf %15, %16 : vector<8x32xf32>
    %c0_15 = arith.constant 0 : index
    %c0_16 = arith.constant 0 : index
    %c0_17 = arith.constant 0 : index
    %18 = vector.load %arg6[%c0_15, %c0_16, %c0_17] : memref<2x32x64xbf16, #tpu.memory_space<vmem>>, vector<1x32x64xbf16>
    %19 = vector.shape_cast %18 : vector<1x32x64xbf16> to vector<32x64xbf16>
    %cst_18 = arith.constant dense<0.000000e+00> : vector<8x64xf32>
    %20 = tpu.matmul %5, %19, %cst_18 {dimension_numbers = #tpu.dot_dimension_numbers<[1], [0], [0], [1], [0, 0, 1, 1], [], []>} : vector<8x32xbf16>, vector<32x64xbf16>, vector<8x64xf32> -> vector<8x64xf32>
    %c0_19 = arith.constant 0 : index
    %c0_20 = arith.constant 0 : index
    %c0_21 = arith.constant 0 : index
    %21 = vector.load %arg10[%c0_19, %c0_20, %c0_21] : memref<2x1x64xf32, #tpu.memory_space<vmem>>, vector<1x1x64xf32>
    %22 = vector.shape_cast %21 : vector<1x1x64xf32> to vector<1x64xf32>
    %23 = vector.broadcast %22 : vector<1x64xf32> to vector<8x64xf32>
    %24 = arith.addf %20, %23 : vector<8x64xf32>
    %25 = arith.truncf %17 : vector<8x32xf32> to vector<8x32xbf16>
    %26 = vector.extract_strided_slice %25 {offsets = [0, 0], sizes = [8, 8], strides = [1, 1]} : vector<8x32xbf16> to vector<8x8xbf16>
    %27 = vector.extract_strided_slice %25 {offsets = [0, 8], sizes = [8, 8], strides = [1, 1]} : vector<8x32xbf16> to vector<8x8xbf16>
    %28 = vector.extract_strided_slice %25 {offsets = [0, 16], sizes = [8, 8], strides = [1, 1]} : vector<8x32xbf16> to vector<8x8xbf16>
    %29 = vector.extract_strided_slice %25 {offsets = [0, 24], sizes = [8, 8], strides = [1, 1]} : vector<8x32xbf16> to vector<8x8xbf16>
    %30 = vector.shape_cast %26 : vector<8x8xbf16> to vector<1x8x8xbf16>
    %31 = vector.shape_cast %27 : vector<8x8xbf16> to vector<1x8x8xbf16>
    %32 = vector.shape_cast %28 : vector<8x8xbf16> to vector<1x8x8xbf16>
    %33 = vector.shape_cast %29 : vector<8x8xbf16> to vector<1x8x8xbf16>
    %34 = tpu.concatenate %30, %31, %32, %33 in 0 : vector<1x8x8xbf16>, vector<1x8x8xbf16>, vector<1x8x8xbf16>, vector<1x8x8xbf16> -> vector<4x8x8xbf16>
    %35 = vector.extract_strided_slice %24 {offsets = [0, 0], sizes = [8, 32], strides = [1, 1]} : vector<8x64xf32> to vector<8x32xf32>
    %36 = arith.truncf %35 : vector<8x32xf32> to vector<8x32xbf16>
    %37 = vector.extract_strided_slice %36 {offsets = [0, 0], sizes = [8, 8], strides = [1, 1]} : vector<8x32xbf16> to vector<8x8xbf16>
    %38 = vector.extract_strided_slice %36 {offsets = [0, 8], sizes = [8, 8], strides = [1, 1]} : vector<8x32xbf16> to vector<8x8xbf16>
    %39 = vector.extract_strided_slice %36 {offsets = [0, 16], sizes = [8, 8], strides = [1, 1]} : vector<8x32xbf16> to vector<8x8xbf16>
    %40 = vector.extract_strided_slice %36 {offsets = [0, 24], sizes = [8, 8], strides = [1, 1]} : vector<8x32xbf16> to vector<8x8xbf16>
    %41 = vector.shape_cast %37 : vector<8x8xbf16> to vector<1x8x8xbf16>
    %42 = vector.shape_cast %38 : vector<8x8xbf16> to vector<1x8x8xbf16>
    %43 = vector.shape_cast %39 : vector<8x8xbf16> to vector<1x8x8xbf16>
    %44 = vector.shape_cast %40 : vector<8x8xbf16> to vector<1x8x8xbf16>
    %45 = tpu.concatenate %41, %42, %43, %44 in 0 : vector<1x8x8xbf16>, vector<1x8x8xbf16>, vector<1x8x8xbf16>, vector<1x8x8xbf16> -> vector<4x8x8xbf16>
    %46 = vector.extract_strided_slice %24 {offsets = [0, 32], sizes = [8, 32], strides = [1, 1]} : vector<8x64xf32> to vector<8x32xf32>
    %47 = arith.truncf %46 : vector<8x32xf32> to vector<8x32xbf16>
    %48 = vector.extract_strided_slice %47 {offsets = [0, 0], sizes = [8, 8], strides = [1, 1]} : vector<8x32xbf16> to vector<8x8xbf16>
    %49 = vector.extract_strided_slice %47 {offsets = [0, 8], sizes = [8, 8], strides = [1, 1]} : vector<8x32xbf16> to vector<8x8xbf16>
    %50 = vector.extract_strided_slice %47 {offsets = [0, 16], sizes = [8, 8], strides = [1, 1]} : vector<8x32xbf16> to vector<8x8xbf16>
    %51 = vector.extract_strided_slice %47 {offsets = [0, 24], sizes = [8, 8], strides = [1, 1]} : vector<8x32xbf16> to vector<8x8xbf16>
    %52 = vector.shape_cast %48 : vector<8x8xbf16> to vector<1x8x8xbf16>
    %53 = vector.shape_cast %49 : vector<8x8xbf16> to vector<1x8x8xbf16>
    %54 = vector.shape_cast %50 : vector<8x8xbf16> to vector<1x8x8xbf16>
    %55 = vector.shape_cast %51 : vector<8x8xbf16> to vector<1x8x8xbf16>
    %56 = tpu.concatenate %52, %53, %54, %55 in 0 : vector<1x8x8xbf16>, vector<1x8x8xbf16>, vector<1x8x8xbf16>, vector<1x8x8xbf16> -> vector<4x8x8xbf16>
    %cst_22 = arith.constant 0xFF800000 : f32
    %57 = vector.broadcast %cst_22 : f32 to vector<4x8x1xf32>
    %cst_23 = arith.constant 0.000000e+00 : f32
    %58 = vector.broadcast %cst_23 : f32 to vector<4x8x1xf32>
    %cst_24 = arith.constant 0.000000e+00 : f32
    %59 = vector.broadcast %cst_24 : f32 to vector<4x8x8xf32>
    "tpu.trace_start"() <{level = 10 : i32, message = "nqd,nkd->nqk"}> : () -> ()
    %cst_25 = arith.constant dense<0.000000e+00> : vector<4x8x8xf32>
    %60 = tpu.matmul %34, %45, %cst_25 {dimension_numbers = #tpu.dot_dimension_numbers<[2], [2], [1], [1], [0, 0, 0, 1, 1, 1], [0], [0]>} : vector<4x8x8xbf16>, vector<4x8x8xbf16>, vector<4x8x8xf32> -> vector<4x8x8xf32>
    "tpu.trace_stop"() : () -> ()
    %cst_26 = arith.constant dense<0xFF800000> : vector<4x8xf32>
    %61 = vector.multi_reduction <maximumf>, %60, %cst_26 [2] : vector<4x8x8xf32> to vector<4x8xf32>
    %62 = vector.shape_cast %61 : vector<4x8xf32> to vector<4x8x1xf32>
    %63 = arith.maximumf %57, %62 : vector<4x8x1xf32>
    %64 = arith.subf %57, %63 : vector<4x8x1xf32>
    %65 = math.exp %64 : vector<4x8x1xf32>
    %66 = vector.broadcast %63 : vector<4x8x1xf32> to vector<4x8x8xf32>
    %67 = arith.subf %60, %66 : vector<4x8x8xf32>
    %68 = math.exp %67 : vector<4x8x8xf32>
    %69 = arith.mulf %65, %58 : vector<4x8x1xf32>
    %cst_27 = arith.constant dense<0.000000e+00> : vector<4x8xf32>
    %70 = vector.multi_reduction <add>, %68, %cst_27 [2] : vector<4x8x8xf32> to vector<4x8xf32>
    %71 = vector.shape_cast %70 : vector<4x8xf32> to vector<4x8x1xf32>
    %72 = arith.addf %69, %71 : vector<4x8x1xf32>
    %73 = vector.broadcast %65 : vector<4x8x1xf32> to vector<4x8x8xf32>
    %74 = arith.mulf %73, %59 : vector<4x8x8xf32>
    %75 = arith.truncf %68 : vector<4x8x8xf32> to vector<4x8x8xbf16>
    "tpu.trace_start"() <{level = 10 : i32, message = "nqk,nkd->nqd"}> : () -> ()
    %cst_28 = arith.constant dense<0.000000e+00> : vector<4x8x8xf32>
    %76 = tpu.matmul %75, %56, %cst_28 {dimension_numbers = #tpu.dot_dimension_numbers<[2], [1], [1], [2], [0, 0, 0, 1, 1, 2], [0], [0]>} : vector<4x8x8xbf16>, vector<4x8x8xbf16>, vector<4x8x8xf32> -> vector<4x8x8xf32>
    "tpu.trace_stop"() : () -> ()
    %77 = arith.addf %74, %76 : vector<4x8x8xf32>
    %78 = tpu.reciprocal %72 {approx = true} : vector<4x8x1xf32> -> vector<4x8x1xf32>
    %79 = vector.broadcast %78 : vector<4x8x1xf32> to vector<4x8x8xf32>
    %80 = arith.mulf %77, %79 : vector<4x8x8xf32>
    %81 = vector.extract_strided_slice %80 {offsets = [0, 0, 0], sizes = [1, 8, 8], strides = [1, 1, 1]} : vector<4x8x8xf32> to vector<1x8x8xf32>
    %82 = vector.shape_cast %81 : vector<1x8x8xf32> to vector<8x8xf32>
    %83 = vector.extract_strided_slice %80 {offsets = [1, 0, 0], sizes = [1, 8, 8], strides = [1, 1, 1]} : vector<4x8x8xf32> to vector<1x8x8xf32>
    %84 = vector.shape_cast %83 : vector<1x8x8xf32> to vector<8x8xf32>
    %85 = vector.extract_strided_slice %80 {offsets = [2, 0, 0], sizes = [1, 8, 8], strides = [1, 1, 1]} : vector<4x8x8xf32> to vector<1x8x8xf32>
    %86 = vector.shape_cast %85 : vector<1x8x8xf32> to vector<8x8xf32>
    %87 = vector.extract_strided_slice %80 {offsets = [3, 0, 0], sizes = [1, 8, 8], strides = [1, 1, 1]} : vector<4x8x8xf32> to vector<1x8x8xf32>
    %88 = vector.shape_cast %87 : vector<1x8x8xf32> to vector<8x8xf32>
    %89 = tpu.concatenate %82, %84, %86, %88 in 1 : vector<8x8xf32>, vector<8x8xf32>, vector<8x8xf32>, vector<8x8xf32> -> vector<8x32xf32>
    %90 = arith.truncf %89 : vector<8x32xf32> to vector<8x32xbf16>
    %c0_29 = arith.constant 0 : index
    %c0_30 = arith.constant 0 : index
    %c0_31 = arith.constant 0 : index
    %91 = vector.load %arg7[%c0_29, %c0_30, %c0_31] : memref<2x32x32xbf16, #tpu.memory_space<vmem>>, vector<1x32x32xbf16>
    %92 = vector.shape_cast %91 : vector<1x32x32xbf16> to vector<32x32xbf16>
    %cst_32 = arith.constant dense<0.000000e+00> : vector<8x32xf32>
    %93 = tpu.matmul %90, %92, %cst_32 {dimension_numbers = #tpu.dot_dimension_numbers<[1], [0], [0], [1], [0, 0, 1, 1], [], []>} : vector<8x32xbf16>, vector<32x32xbf16>, vector<8x32xf32> -> vector<8x32xf32>
    %c2 = arith.constant 2 : index
    %c0_33 = arith.constant 0 : index
    %c0_34 = arith.constant 0 : index
    %94 = vector.load %arg12[%c2, %c0_33, %c0_34] : memref<7x1x32xf32, #tpu.memory_space<vmem>>, vector<1x1x32xf32>
    %95 = vector.shape_cast %94 : vector<1x1x32xf32> to vector<1x32xf32>
    %96 = vector.broadcast %95 : vector<1x32xf32> to vector<8x32xf32>
    %97 = arith.addf %93, %96 : vector<8x32xf32>
    %98 = arith.truncf %97 : vector<8x32xf32> to vector<8x32xbf16>
    %c1 = arith.constant 1 : index
    %c0_35 = arith.constant 0 : index
    %c0_36 = arith.constant 0 : index
    %99 = vector.load %arg5[%c1, %c0_35, %c0_36] : memref<2x32x32xbf16, #tpu.memory_space<vmem>>, vector<1x32x32xbf16>
    %100 = vector.shape_cast %99 : vector<1x32x32xbf16> to vector<32x32xbf16>
    %cst_37 = arith.constant dense<0.000000e+00> : vector<8x32xf32>
    %101 = tpu.matmul %98, %100, %cst_37 {dimension_numbers = #tpu.dot_dimension_numbers<[1], [0], [0], [1], [0, 0, 1, 1], [], []>} : vector<8x32xbf16>, vector<32x32xbf16>, vector<8x32xf32> -> vector<8x32xf32>
    %c1_38 = arith.constant 1 : index
    %c0_39 = arith.constant 0 : index
    %c0_40 = arith.constant 0 : index
    %102 = vector.load %arg12[%c1_38, %c0_39, %c0_40] : memref<7x1x32xf32, #tpu.memory_space<vmem>>, vector<1x1x32xf32>
    %103 = vector.shape_cast %102 : vector<1x1x32xf32> to vector<1x32xf32>
    %104 = vector.broadcast %103 : vector<1x32xf32> to vector<8x32xf32>
    %105 = arith.addf %101, %104 : vector<8x32xf32>
    %cst_41 = arith.constant 0.353553385 : f32
    %106 = vector.broadcast %cst_41 : f32 to vector<8x32xf32>
    %107 = arith.mulf %105, %106 : vector<8x32xf32>
    %c1_42 = arith.constant 1 : index
    %c0_43 = arith.constant 0 : index
    %c0_44 = arith.constant 0 : index
    %108 = vector.load %arg6[%c1_42, %c0_43, %c0_44] : memref<2x32x64xbf16, #tpu.memory_space<vmem>>, vector<1x32x64xbf16>
    %109 = vector.shape_cast %108 : vector<1x32x64xbf16> to vector<32x64xbf16>
    %cst_45 = arith.constant dense<0.000000e+00> : vector<8x64xf32>
    %110 = tpu.matmul %8, %109, %cst_45 {dimension_numbers = #tpu.dot_dimension_numbers<[1], [0], [0], [1], [0, 0, 1, 1], [], []>} : vector<8x32xbf16>, vector<32x64xbf16>, vector<8x64xf32> -> vector<8x64xf32>
    %c1_46 = arith.constant 1 : index
    %c0_47 = arith.constant 0 : index
    %c0_48 = arith.constant 0 : index
    %111 = vector.load %arg10[%c1_46, %c0_47, %c0_48] : memref<2x1x64xf32, #tpu.memory_space<vmem>>, vector<1x1x64xf32>
    %112 = vector.shape_cast %111 : vector<1x1x64xf32> to vector<1x64xf32>
    %113 = vector.broadcast %112 : vector<1x64xf32> to vector<8x64xf32>
    %114 = arith.addf %110, %113 : vector<8x64xf32>
    %115 = arith.truncf %107 : vector<8x32xf32> to vector<8x32xbf16>
    %116 = vector.extract_strided_slice %115 {offsets = [0, 0], sizes = [8, 8], strides = [1, 1]} : vector<8x32xbf16> to vector<8x8xbf16>
    %117 = vector.extract_strided_slice %115 {offsets = [0, 8], sizes = [8, 8], strides = [1, 1]} : vector<8x32xbf16> to vector<8x8xbf16>
    %118 = vector.extract_strided_slice %115 {offsets = [0, 16], sizes = [8, 8], strides = [1, 1]} : vector<8x32xbf16> to vector<8x8xbf16>
    %119 = vector.extract_strided_slice %115 {offsets = [0, 24], sizes = [8, 8], strides = [1, 1]} : vector<8x32xbf16> to vector<8x8xbf16>
    %120 = vector.shape_cast %116 : vector<8x8xbf16> to vector<1x8x8xbf16>
    %121 = vector.shape_cast %117 : vector<8x8xbf16> to vector<1x8x8xbf16>
    %122 = vector.shape_cast %118 : vector<8x8xbf16> to vector<1x8x8xbf16>
    %123 = vector.shape_cast %119 : vector<8x8xbf16> to vector<1x8x8xbf16>
    %124 = tpu.concatenate %120, %121, %122, %123 in 0 : vector<1x8x8xbf16>, vector<1x8x8xbf16>, vector<1x8x8xbf16>, vector<1x8x8xbf16> -> vector<4x8x8xbf16>
    %125 = vector.extract_strided_slice %114 {offsets = [0, 0], sizes = [8, 32], strides = [1, 1]} : vector<8x64xf32> to vector<8x32xf32>
    %126 = arith.truncf %125 : vector<8x32xf32> to vector<8x32xbf16>
    %127 = vector.extract_strided_slice %126 {offsets = [0, 0], sizes = [8, 8], strides = [1, 1]} : vector<8x32xbf16> to vector<8x8xbf16>
    %128 = vector.extract_strided_slice %126 {offsets = [0, 8], sizes = [8, 8], strides = [1, 1]} : vector<8x32xbf16> to vector<8x8xbf16>
    %129 = vector.extract_strided_slice %126 {offsets = [0, 16], sizes = [8, 8], strides = [1, 1]} : vector<8x32xbf16> to vector<8x8xbf16>
    %130 = vector.extract_strided_slice %126 {offsets = [0, 24], sizes = [8, 8], strides = [1, 1]} : vector<8x32xbf16> to vector<8x8xbf16>
    %131 = vector.shape_cast %127 : vector<8x8xbf16> to vector<1x8x8xbf16>
    %132 = vector.shape_cast %128 : vector<8x8xbf16> to vector<1x8x8xbf16>
    %133 = vector.shape_cast %129 : vector<8x8xbf16> to vector<1x8x8xbf16>
    %134 = vector.shape_cast %130 : vector<8x8xbf16> to vector<1x8x8xbf16>
    %135 = tpu.concatenate %131, %132, %133, %134 in 0 : vector<1x8x8xbf16>, vector<1x8x8xbf16>, vector<1x8x8xbf16>, vector<1x8x8xbf16> -> vector<4x8x8xbf16>
    %136 = vector.extract_strided_slice %114 {offsets = [0, 32], sizes = [8, 32], strides = [1, 1]} : vector<8x64xf32> to vector<8x32xf32>
    %137 = arith.truncf %136 : vector<8x32xf32> to vector<8x32xbf16>
    %138 = vector.extract_strided_slice %137 {offsets = [0, 0], sizes = [8, 8], strides = [1, 1]} : vector<8x32xbf16> to vector<8x8xbf16>
    %139 = vector.extract_strided_slice %137 {offsets = [0, 8], sizes = [8, 8], strides = [1, 1]} : vector<8x32xbf16> to vector<8x8xbf16>
    %140 = vector.extract_strided_slice %137 {offsets = [0, 16], sizes = [8, 8], strides = [1, 1]} : vector<8x32xbf16> to vector<8x8xbf16>
    %141 = vector.extract_strided_slice %137 {offsets = [0, 24], sizes = [8, 8], strides = [1, 1]} : vector<8x32xbf16> to vector<8x8xbf16>
    %142 = vector.shape_cast %138 : vector<8x8xbf16> to vector<1x8x8xbf16>
    %143 = vector.shape_cast %139 : vector<8x8xbf16> to vector<1x8x8xbf16>
    %144 = vector.shape_cast %140 : vector<8x8xbf16> to vector<1x8x8xbf16>
    %145 = vector.shape_cast %141 : vector<8x8xbf16> to vector<1x8x8xbf16>
    %146 = tpu.concatenate %142, %143, %144, %145 in 0 : vector<1x8x8xbf16>, vector<1x8x8xbf16>, vector<1x8x8xbf16>, vector<1x8x8xbf16> -> vector<4x8x8xbf16>
    %cst_49 = arith.constant 0xFF800000 : f32
    %147 = vector.broadcast %cst_49 : f32 to vector<4x8x1xf32>
    %cst_50 = arith.constant 0.000000e+00 : f32
    %148 = vector.broadcast %cst_50 : f32 to vector<4x8x1xf32>
    %cst_51 = arith.constant 0.000000e+00 : f32
    %149 = vector.broadcast %cst_51 : f32 to vector<4x8x8xf32>
    "tpu.trace_start"() <{level = 10 : i32, message = "nqd,nkd->nqk"}> : () -> ()
    %cst_52 = arith.constant dense<0.000000e+00> : vector<4x8x8xf32>
    %150 = tpu.matmul %124, %135, %cst_52 {dimension_numbers = #tpu.dot_dimension_numbers<[2], [2], [1], [1], [0, 0, 0, 1, 1, 1], [0], [0]>} : vector<4x8x8xbf16>, vector<4x8x8xbf16>, vector<4x8x8xf32> -> vector<4x8x8xf32>
    "tpu.trace_stop"() : () -> ()
    %cst_53 = arith.constant dense<0xFF800000> : vector<4x8xf32>
    %151 = vector.multi_reduction <maximumf>, %150, %cst_53 [2] : vector<4x8x8xf32> to vector<4x8xf32>
    %152 = vector.shape_cast %151 : vector<4x8xf32> to vector<4x8x1xf32>
    %153 = arith.maximumf %147, %152 : vector<4x8x1xf32>
    %154 = arith.subf %147, %153 : vector<4x8x1xf32>
    %155 = math.exp %154 : vector<4x8x1xf32>
    %156 = vector.broadcast %153 : vector<4x8x1xf32> to vector<4x8x8xf32>
    %157 = arith.subf %150, %156 : vector<4x8x8xf32>
    %158 = math.exp %157 : vector<4x8x8xf32>
    %159 = arith.mulf %155, %148 : vector<4x8x1xf32>
    %cst_54 = arith.constant dense<0.000000e+00> : vector<4x8xf32>
    %160 = vector.multi_reduction <add>, %158, %cst_54 [2] : vector<4x8x8xf32> to vector<4x8xf32>
    %161 = vector.shape_cast %160 : vector<4x8xf32> to vector<4x8x1xf32>
    %162 = arith.addf %159, %161 : vector<4x8x1xf32>
    %163 = vector.broadcast %155 : vector<4x8x1xf32> to vector<4x8x8xf32>
    %164 = arith.mulf %163, %149 : vector<4x8x8xf32>
    %165 = arith.truncf %158 : vector<4x8x8xf32> to vector<4x8x8xbf16>
    "tpu.trace_start"() <{level = 10 : i32, message = "nqk,nkd->nqd"}> : () -> ()
    %cst_55 = arith.constant dense<0.000000e+00> : vector<4x8x8xf32>
    %166 = tpu.matmul %165, %146, %cst_55 {dimension_numbers = #tpu.dot_dimension_numbers<[2], [1], [1], [2], [0, 0, 0, 1, 1, 2], [0], [0]>} : vector<4x8x8xbf16>, vector<4x8x8xbf16>, vector<4x8x8xf32> -> vector<4x8x8xf32>
    "tpu.trace_stop"() : () -> ()
    %167 = arith.addf %164, %166 : vector<4x8x8xf32>
    %168 = tpu.reciprocal %162 {approx = true} : vector<4x8x1xf32> -> vector<4x8x1xf32>
    %169 = vector.broadcast %168 : vector<4x8x1xf32> to vector<4x8x8xf32>
    %170 = arith.mulf %167, %169 : vector<4x8x8xf32>
    %171 = vector.extract_strided_slice %170 {offsets = [0, 0, 0], sizes = [1, 8, 8], strides = [1, 1, 1]} : vector<4x8x8xf32> to vector<1x8x8xf32>
    %172 = vector.shape_cast %171 : vector<1x8x8xf32> to vector<8x8xf32>
    %173 = vector.extract_strided_slice %170 {offsets = [1, 0, 0], sizes = [1, 8, 8], strides = [1, 1, 1]} : vector<4x8x8xf32> to vector<1x8x8xf32>
    %174 = vector.shape_cast %173 : vector<1x8x8xf32> to vector<8x8xf32>
    %175 = vector.extract_strided_slice %170 {offsets = [2, 0, 0], sizes = [1, 8, 8], strides = [1, 1, 1]} : vector<4x8x8xf32> to vector<1x8x8xf32>
    %176 = vector.shape_cast %175 : vector<1x8x8xf32> to vector<8x8xf32>
    %177 = vector.extract_strided_slice %170 {offsets = [3, 0, 0], sizes = [1, 8, 8], strides = [1, 1, 1]} : vector<4x8x8xf32> to vector<1x8x8xf32>
    %178 = vector.shape_cast %177 : vector<1x8x8xf32> to vector<8x8xf32>
    %179 = tpu.concatenate %172, %174, %176, %178 in 1 : vector<8x8xf32>, vector<8x8xf32>, vector<8x8xf32>, vector<8x8xf32> -> vector<8x32xf32>
    %180 = arith.truncf %179 : vector<8x32xf32> to vector<8x32xbf16>
    %c1_56 = arith.constant 1 : index
    %c0_57 = arith.constant 0 : index
    %c0_58 = arith.constant 0 : index
    %181 = vector.load %arg7[%c1_56, %c0_57, %c0_58] : memref<2x32x32xbf16, #tpu.memory_space<vmem>>, vector<1x32x32xbf16>
    %182 = vector.shape_cast %181 : vector<1x32x32xbf16> to vector<32x32xbf16>
    %cst_59 = arith.constant dense<0.000000e+00> : vector<8x32xf32>
    %183 = tpu.matmul %180, %182, %cst_59 {dimension_numbers = #tpu.dot_dimension_numbers<[1], [0], [0], [1], [0, 0, 1, 1], [], []>} : vector<8x32xbf16>, vector<32x32xbf16>, vector<8x32xf32> -> vector<8x32xf32>
    %c3 = arith.constant 3 : index
    %c0_60 = arith.constant 0 : index
    %c0_61 = arith.constant 0 : index
    %184 = vector.load %arg12[%c3, %c0_60, %c0_61] : memref<7x1x32xf32, #tpu.memory_space<vmem>>, vector<1x1x32xf32>
    %185 = vector.shape_cast %184 : vector<1x1x32xf32> to vector<1x32xf32>
    %186 = vector.broadcast %185 : vector<1x32xf32> to vector<8x32xf32>
    %187 = arith.addf %183, %186 : vector<8x32xf32>
    %188 = arith.addf %97, %187 : vector<8x32xf32>
    %189 = arith.truncf %188 : vector<8x32xf32> to vector<8x32xbf16>
    %c0_62 = arith.constant 0 : index
    %c0_63 = arith.constant 0 : index
    %190 = vector.load %arg8[%c0_62, %c0_63] : memref<32x128xbf16, #tpu.memory_space<vmem>>, vector<32x128xbf16>
    %cst_64 = arith.constant dense<0.000000e+00> : vector<8x128xf32>
    %191 = tpu.matmul %189, %190, %cst_64 {dimension_numbers = #tpu.dot_dimension_numbers<[1], [0], [0], [1], [0, 0, 1, 1], [], []>} : vector<8x32xbf16>, vector<32x128xbf16>, vector<8x128xf32> -> vector<8x128xf32>
    %c0_65 = arith.constant 0 : index
    %c0_66 = arith.constant 0 : index
    %192 = vector.load %arg11[%c0_65, %c0_66] : memref<1x128xf32, #tpu.memory_space<vmem>>, vector<1x128xf32>
    %193 = vector.broadcast %192 : vector<1x128xf32> to vector<8x128xf32>
    %194 = arith.addf %191, %193 : vector<8x128xf32>
    %cst_67 = arith.constant 0.000000e+00 : f32
    %195 = vector.broadcast %cst_67 : f32 to vector<8x128xf32>
    %196 = arith.maximumf %194, %195 : vector<8x128xf32>
    %197 = arith.truncf %196 : vector<8x128xf32> to vector<8x128xbf16>
    %c0_68 = arith.constant 0 : index
    %c0_69 = arith.constant 0 : index
    %198 = vector.load %arg9[%c0_68, %c0_69] : memref<128x32xbf16, #tpu.memory_space<vmem>>, vector<128x32xbf16>
    %cst_70 = arith.constant dense<0.000000e+00> : vector<8x32xf32>
    %199 = tpu.matmul %197, %198, %cst_70 {dimension_numbers = #tpu.dot_dimension_numbers<[1], [0], [0], [1], [0, 0, 1, 1], [], []>} : vector<8x128xbf16>, vector<128x32xbf16>, vector<8x32xf32> -> vector<8x32xf32>
    %c4 = arith.constant 4 : index
    %c0_71 = arith.constant 0 : index
    %c0_72 = arith.constant 0 : index
    %200 = vector.load %arg12[%c4, %c0_71, %c0_72] : memref<7x1x32xf32, #tpu.memory_space<vmem>>, vector<1x1x32xf32>
    %201 = vector.shape_cast %200 : vector<1x1x32xf32> to vector<1x32xf32>
    %202 = vector.broadcast %201 : vector<1x32xf32> to vector<8x32xf32>
    %203 = arith.addf %199, %202 : vector<8x32xf32>
    %204 = arith.addf %203, %203 : vector<8x32xf32>
    %cst_73 = arith.constant dense<0.000000e+00> : vector<8xf32>
    %205 = vector.multi_reduction <add>, %204, %cst_73 [1] : vector<8x32xf32> to vector<8xf32>
    %206 = vector.shape_cast %205 : vector<8xf32> to vector<8x1xf32>
    %cst_74 = arith.constant 3.200000e+01 : f32
    %207 = vector.broadcast %cst_74 : f32 to vector<8x1xf32>
    %208 = arith.divf %206, %207 : vector<8x1xf32>
    %209 = vector.broadcast %208 : vector<8x1xf32> to vector<8x32xf32>
    %210 = arith.subf %204, %209 : vector<8x32xf32>
    %211 = arith.mulf %210, %210 : vector<8x32xf32>
    %cst_75 = arith.constant dense<0.000000e+00> : vector<8xf32>
    %212 = vector.multi_reduction <add>, %211, %cst_75 [1] : vector<8x32xf32> to vector<8xf32>
    %213 = vector.shape_cast %212 : vector<8xf32> to vector<8x1xf32>
    %cst_76 = arith.constant 3.200000e+01 : f32
    %214 = vector.broadcast %cst_76 : f32 to vector<8x1xf32>
    %215 = arith.divf %213, %214 : vector<8x1xf32>
    %cst_77 = arith.constant 9.99999974E-6 : f32
    %216 = vector.broadcast %cst_77 : f32 to vector<8x1xf32>
    %217 = arith.addf %215, %216 : vector<8x1xf32>
    %218 = math.rsqrt %217 : vector<8x1xf32>
    %219 = vector.broadcast %218 : vector<8x1xf32> to vector<8x32xf32>
    %220 = arith.mulf %210, %219 : vector<8x32xf32>
    %c5 = arith.constant 5 : index
    %c0_78 = arith.constant 0 : index
    %c0_79 = arith.constant 0 : index
    %221 = vector.load %arg12[%c5, %c0_78, %c0_79] : memref<7x1x32xf32, #tpu.memory_space<vmem>>, vector<1x1x32xf32>
    %222 = vector.shape_cast %221 : vector<1x1x32xf32> to vector<1x32xf32>
    %223 = vector.broadcast %222 : vector<1x32xf32> to vector<8x32xf32>
    %224 = arith.mulf %220, %223 : vector<8x32xf32>
    %c6 = arith.constant 6 : index
    %c0_80 = arith.constant 0 : index
    %c0_81 = arith.constant 0 : index
    %225 = vector.load %arg12[%c6, %c0_80, %c0_81] : memref<7x1x32xf32, #tpu.memory_space<vmem>>, vector<1x1x32xf32>
    %226 = vector.shape_cast %225 : vector<1x1x32xf32> to vector<1x32xf32>
    %227 = vector.broadcast %226 : vector<1x32xf32> to vector<8x32xf32>
    %228 = arith.addf %224, %227 : vector<8x32xf32>
    %c0_82 = arith.constant 0 : index
    %c0_83 = arith.constant 0 : index
    %c0_84 = arith.constant 0 : index
    %229 = vector.load %arg13[%c0_82, %c0_83, %c0_84] : memref<1x8x32xf32, #tpu.memory_space<vmem>>, vector<1x8x32xf32>
    %230 = vector.shape_cast %229 : vector<1x8x32xf32> to vector<8x32xf32>
    %231 = vector.shape_cast %228 : vector<8x32xf32> to vector<1x8x32xf32>
    tpu.vector_store %arg13[%c0_82, %c0_83, %c0_84], %231 {strides = array<i32>} : memref<1x8x32xf32, #tpu.memory_space<vmem>>, vector<1x8x32xf32>,
    return
  }
  func.func @transform_0(%arg0: i32, %arg1: i32) -> (i32, i32, i32) {
    %c0_i32 = arith.constant 0 : i32
    %c0_i32_0 = arith.constant 0 : i32
    return %arg0, %arg1, %c0_i32 : i32, i32, i32
  }
  func.func @transform_1(%arg0: i32, %arg1: i32) -> (i32, i32, i32) {
    %c0_i32 = arith.constant 0 : i32
    %c0_i32_0 = arith.constant 0 : i32
    %c0_i32_1 = arith.constant 0 : i32
    return %arg0, %c0_i32, %c0_i32_0 : i32, i32, i32
  }
  func.func @transform_2(%arg0: i32, %arg1: i32) -> (i32, i32, i32) {
    %c0_i32 = arith.constant 0 : i32
    %c0_i32_0 = arith.constant 0 : i32
    %c0_i32_1 = arith.constant 0 : i32
    return %arg0, %c0_i32, %c0_i32_0 : i32, i32, i32
  }
  func.func @transform_3(%arg0: i32, %arg1: i32) -> (i32, i32, i32) {
    %c0_i32 = arith.constant 0 : i32
    %c0_i32_0 = arith.constant 0 : i32
    %c0_i32_1 = arith.constant 0 : i32
    %c0_i32_2 = arith.constant 0 : i32
    return %c0_i32, %c0_i32_0, %c0_i32_1 : i32, i32, i32
  }
  func.func @transform_4(%arg0: i32, %arg1: i32) -> (i32, i32, i32) {
    %c0_i32 = arith.constant 0 : i32
    %c0_i32_0 = arith.constant 0 : i32
    %c0_i32_1 = arith.constant 0 : i32
    %c0_i32_2 = arith.constant 0 : i32
    return %c0_i32, %c0_i32_0, %c0_i32_1 : i32, i32, i32
  }
  func.func @transform_5(%arg0: i32, %arg1: i32) -> (i32, i32, i32) {
    %c0_i32 = arith.constant 0 : i32
    %c0_i32_0 = arith.constant 0 : i32
    %c0_i32_1 = arith.constant 0 : i32
    %c0_i32_2 = arith.constant 0 : i32
    return %c0_i32, %c0_i32_0, %c0_i32_1 : i32, i32, i32
  }
  func.func @transform_6(%arg0: i32, %arg1: i32) -> (i32, i32) {
    %c0_i32 = arith.constant 0 : i32
    %c0_i32_0 = arith.constant 0 : i32
    %c0_i32_1 = arith.constant 0 : i32
    return %c0_i32, %c0_i32_0 : i32, i32
  }
  func.func @transform_7(%arg0: i32, %arg1: i32) -> (i32, i32) {
    %c0_i32 = arith.constant 0 : i32
    %c0_i32_0 = arith.constant 0 : i32
    %c0_i32_1 = arith.constant 0 : i32
    return %c0_i32, %c0_i32_0 : i32, i32
  }
  func.func @transform_8(%arg0: i32, %arg1: i32) -> (i32, i32, i32) {
    %c0_i32 = arith.constant 0 : i32
    %c0_i32_0 = arith.constant 0 : i32
    %c0_i32_1 = arith.constant 0 : i32
    %c0_i32_2 = arith.constant 0 : i32
    return %c0_i32, %c0_i32_0, %c0_i32_1 : i32, i32, i32
  }
  func.func @transform_9(%arg0: i32, %arg1: i32) -> (i32, i32) {
    %c0_i32 = arith.constant 0 : i32
    %c0_i32_0 = arith.constant 0 : i32
    %c0_i32_1 = arith.constant 0 : i32
    return %c0_i32, %c0_i32_0 : i32, i32
  }
  func.func @transform_10(%arg0: i32, %arg1: i32) -> (i32, i32, i32) {
    %c0_i32 = arith.constant 0 : i32
    %c0_i32_0 = arith.constant 0 : i32
    %c0_i32_1 = arith.constant 0 : i32
    %c0_i32_2 = arith.constant 0 : i32
    return %c0_i32, %c0_i32_0, %c0_i32_1 : i32, i32, i32
  }
  func.func @transform_11(%arg0: i32, %arg1: i32) -> (i32, i32, i32) {
    %c0_i32 = arith.constant 0 : i32
    %c0_i32_0 = arith.constant 0 : i32
    return %arg0, %arg1, %c0_i32 : i32, i32, i32
  }
}

</mosaic_0001>

<llo_original>
// kernel: tpu_custom_call.1
$region0: #{tpu_custom_call.1}
  #allocation0 [shape = 'u32[]', space=smem, size = 0x4, offset = 0x4, fixed_abs, tag = 'smem constant byte address 0x4 - core index']
  #allocation1 [shape = 'u32[144,128]{1,0:T(1,128)}', space=vmem, size = 0x12000, scoped, tag = 'internal scratch']
  %s0 = inlined_call_operand.vmem [shape: f32[2,8,32], index: 0, kind: input, shape index: {}]
  %s1 = inlined_call_operand.hbm [shape: f32[2,8,32], index: 1, kind: input, shape index: {}]
  %s2 = inlined_call_operand.hbm [shape: f32[2,8,32], index: 2, kind: input, shape index: {}]
  %s3 = inlined_call_operand.vmem [shape: bf16[2,32,32], index: 3, kind: input, shape index: {}]
  %s4 = inlined_call_operand.vmem [shape: bf16[2,32,64], index: 4, kind: input, shape index: {}]
  %s5 = inlined_call_operand.hbm [shape: bf16[2,32,32], index: 5, kind: input, shape index: {}]
  %s6 = inlined_call_operand.hbm [shape: bf16[32,128], index: 6, kind: input, shape index: {}]
  %s7 = inlined_call_operand.vmem [shape: bf16[128,32], index: 7, kind: input, shape index: {}]
  %s8 = inlined_call_operand.vmem [shape: f32[2,1,64], index: 8, kind: input, shape index: {}]
  %s9 = inlined_call_operand.vmem [shape: f32[1,128], index: 9, kind: input, shape index: {}]
  %s10 = inlined_call_operand.vmem [shape: f32[7,1,32], index: 10, kind: input, shape index: {}]
  %s11 = inlined_call_operand.hbm [shape: f32[2,8,32], index: 11, kind: output, shape index: {}]
  %s12 = sld [smem:[#allocation0]]
  $region93: #{tpu_custom_call.1} parent=0
    _
  %s14 = ssub.s32 1, %s12
  %s15 = scalar_select 0, %s14, %s12
  $region1: #{tpu_custom_call.1} parent=0
    #allocation2 [shape = 'u8[8192]{0}', space=vmem, size = 0x2000, scoped, tag = 'input window, operand 1']
    #allocation3 [shape = 's32[2]{0}', space=sflag, size = 0x8, scoped, tag = 'scoped memory for tpu_custom_call.1']
    #allocation4 [shape = 's32[2]{0}', space=sflag, size = 0x8, scoped, tag = 'scoped memory for tpu_custom_call.1']
    #allocation5 [shape = 'u8[8192]{0}', space=vmem, size = 0x2000, scoped, tag = 'input window, operand 2']
    #allocation6 [shape = 's32[2]{0}', space=sflag, size = 0x8, scoped, tag = 'scoped memory for tpu_custom_call.1']
    #allocation7 [shape = 'u8[16384]{0}', space=vmem, size = 0x4000, scoped, tag = 'input window, operand 5, single buffered']
    #allocation8 [shape = 'u8[8192]{0}', space=vmem, size = 0x2000, scoped, tag = 'input window, operand 6, single buffered']
    #allocation9 [shape = 's32[1]{0}', space=sflag, size = 0x4, scoped, tag = 'scoped memory for tpu_custom_call.1']
    #allocation10 [shape = 'u8[8192]{0}', space=vmem, size = 0x2000, scoped, tag = 'output window, operand 0']
    %16 = vsyncpa [#allocation3], 0
    %s17 = scalar_lea.sflag [#allocation3], 1
    %18 = vsyncpa %s17, 0
    %19 = vsyncpa [#allocation6], 0
    %s20 = scalar_lea.sflag [#allocation6], 1
    %21 = vsyncpa %s20, 0
    %22 = vsyncpa [#allocation9], 0
    %23 = vsyncpa [#allocation4], 0
    %s24 = scalar_lea.sflag [#allocation4], 1
    %25 = vsyncpa %s24, 0
    loop: start=0, step=1, limit=4
    $region2: #{tpu_custom_call.1} parent=1 // loop_pre_header
      _
    $region3: #{tpu_custom_call.1} parent=1 // loop_header
      %s27 = sphi 0, %s31
      %p28 = scmp.ge.s32.totalorder %s27, 4
      %s34 = sphi 0, %s46
      %s35 = sphi 0, %s42
      %s36 = sphi 0, %s34
      %s37 = sphi 0, %s35
      %s38 = sphi 0, %s36
      %s39 = sphi 0, %s37
      %s51 = sphi 0, %s53
      %s54 = sphi 0, %s51
      %s55 = sphi 0, %s54
      %s71 = sphi 0, %s55
      %s77 = sphi 0, %s79
      %s80 = sphi 0, %s77
      %s81 = sphi 0, %s80
      %s97 = sphi 0, %s81
      %s103 = sphi 0, %s105
      %s106 = sphi 0, %s103
      %s107 = sphi 0, %s106
      %s123 = sphi 0, %s107
      %s127 = sphi 0, %s127
      %s129 = sphi 0, %s127
      %s130 = sphi 0, %s129
      %s144 = sphi 0, %s130
      %s148 = sphi 0, %s148
      %s150 = sphi 0, %s148
      %s151 = sphi 0, %s150
      %s165 = sphi 0, %s151
      %s169 = sphi 0, %s169
      %s171 = sphi 0, %s169
      %s172 = sphi 0, %s171
      %s186 = sphi 0, %s172
      %s190 = sphi 0, %s190
      %s192 = sphi 0, %s190
      %s193 = sphi 0, %s192
      %s207 = sphi 0, %s193
      %s211 = sphi 0, %s211
      %s213 = sphi 0, %s211
      %s214 = sphi 0, %s213
      %s228 = sphi 0, %s214
      %s232 = sphi 0, %s232
      %s234 = sphi 0, %s232
      %s235 = sphi 0, %s234
      %s249 = sphi 0, %s235
      %s253 = sphi 0, %s253
      %s255 = sphi 0, %s253
      %s256 = sphi 0, %s255
      %s270 = sphi 0, %s256
      %s274 = sphi 0, %s274
      %s276 = sphi 0, %s274
      %s277 = sphi 0, %s276
      %s291 = sphi 0, %s277
      %s299 = sphi 0, %s301
      %s302 = sphi 0, %s299
      %s303 = sphi 0, %s302
      %s319 = sphi 0, %s303
    $region4: #{tpu_custom_call.1} parent=1 // loop_header_branch
      %30 = sbr.rel (%p28) target = $region8
    $region5: #{tpu_custom_call.1} parent=1 // loop_body
      %s32 = ssub.s32 %s27, 1
      %s33 = ssub.s32 %s27, 2
      %s40 = sadd.s32 1, %s35
      %p41 = scmp.ge.s32.totalorder %s40, 1
      %s42 = scalar_select %p41, 0, %s40
      %s43 = sadd.s32 1, %s34
      %s44 = scalar_select %p41, %s43, %s34
      %p45 = scmp.ge.s32.totalorder %s44, 2
      %s46 = scalar_select %p45, 0, %s44
      %s47 = ssub.s32 %s34, %s46
      %s48 = ssub.s32 %s35, %s42
      %s49 = sor.u32 %s47, %s48
      %p50 = scmp.eq.s32.totalorder %s49, 0
      %s52 = sadd.s32 %s51, 1
      %s53 = scalar_select %p50, %s51, %s52
      %p56 = pneg %p50
      %p57 = scmp.eq.s32.totalorder %s27, 1
      %p58 = por %p56, %p57
      %p59 = scmp.ne.s32.totalorder %s51, %s54
      %p60 = scmp.eq.s32.totalorder %s27, 0
      %p61 = por %p59, %p60
      %p62 = scmp.ne.s32.totalorder %s51, %s54
      %p63 = scmp.eq.s32.totalorder %s32, 1
      %p64 = por %p62, %p63
      %p65 = scmp.ne.s32.totalorder %s54, %s55
      %p66 = scmp.eq.s32.totalorder %s32, 0
      %p67 = por %p65, %p66
      %p68 = scmp.ne.s32.totalorder %s54, %s55
      %p69 = scmp.eq.s32.totalorder %s33, 1
      %p70 = por %p68, %p69
      %p72 = scmp.ne.s32.totalorder %s55, %s71
      %p73 = scmp.eq.s32.totalorder %s33, 0
      %p74 = por %p72, %p73
      %s75 = ssub.s32 %s34, %s46
      %p76 = scmp.eq.s32.totalorder %s75, 0
      %s78 = sadd.s32 %s77, 1
      %s79 = scalar_select %p76, %s77, %s78
      %p82 = pneg %p76
      %p83 = scmp.eq.s32.totalorder %s27, 1
      %p84 = por %p82, %p83
      %p85 = scmp.ne.s32.totalorder %s77, %s80
      %p86 = scmp.eq.s32.totalorder %s27, 0
      %p87 = por %p85, %p86
      %p88 = scmp.ne.s32.totalorder %s77, %s80
      %p89 = scmp.eq.s32.totalorder %s32, 1
      %p90 = por %p88, %p89
      %p91 = scmp.ne.s32.totalorder %s80, %s81
      %p92 = scmp.eq.s32.totalorder %s32, 0
      %p93 = por %p91, %p92
      %p94 = scmp.ne.s32.totalorder %s80, %s81
      %p95 = scmp.eq.s32.totalorder %s33, 1
      %p96 = por %p94, %p95
      %p98 = scmp.ne.s32.totalorder %s81, %s97
      %p99 = scmp.eq.s32.totalorder %s33, 0
      %p100 = por %p98, %p99
      %s101 = ssub.s32 %s34, %s46
      %p102 = scmp.eq.s32.totalorder %s101, 0
      %s104 = sadd.s32 %s103, 1
      %s105 = scalar_select %p102, %s103, %s104
      %p108 = pneg %p102
      %p109 = scmp.eq.s32.totalorder %s27, 1
      %p110 = por %p108, %p109
      %p111 = scmp.ne.s32.totalorder %s103, %s106
      %p112 = scmp.eq.s32.totalorder %s27, 0
      %p113 = por %p111, %p112
      %p114 = scmp.ne.s32.totalorder %s103, %s106
      %p115 = scmp.eq.s32.totalorder %s32, 1
      %p116 = por %p114, %p115
      %p117 = scmp.ne.s32.totalorder %s106, %s107
      %p118 = scmp.eq.s32.totalorder %s32, 0
      %p119 = por %p117, %p118
      %p120 = scmp.ne.s32.totalorder %s106, %s107
      %p121 = scmp.eq.s32.totalorder %s33, 1
      %p122 = por %p120, %p121
      %p124 = scmp.ne.s32.totalorder %s107, %s123
      %p125 = scmp.eq.s32.totalorder %s33, 0
      %p126 = por %p124, %p125
      %s128 = sadd.s32 %s127, 1
      %p131 = scmp.eq.s32.totalorder %s27, 1
      %p132 = scmp.ne.s32.totalorder %s127, %s129
      %p133 = scmp.eq.s32.totalorder %s27, 0
      %p134 = por %p132, %p133
      %p135 = scmp.ne.s32.totalorder %s127, %s129
      %p136 = scmp.eq.s32.totalorder %s32, 1
      %p137 = por %p135, %p136
      %p138 = scmp.ne.s32.totalorder %s129, %s130
      %p139 = scmp.eq.s32.totalorder %s32, 0
      %p140 = por %p138, %p139
      %p141 = scmp.ne.s32.totalorder %s129, %s130
      %p142 = scmp.eq.s32.totalorder %s33, 1
      %p143 = por %p141, %p142
      %p145 = scmp.ne.s32.totalorder %s130, %s144
      %p146 = scmp.eq.s32.totalorder %s33, 0
      %p147 = por %p145, %p146
      %s149 = sadd.s32 %s148, 1
      %p152 = scmp.eq.s32.totalorder %s27, 1
      %p153 = scmp.ne.s32.totalorder %s148, %s150
      %p154 = scmp.eq.s32.totalorder %s27, 0
      %p155 = por %p153, %p154
      %p156 = scmp.ne.s32.totalorder %s148, %s150
      %p157 = scmp.eq.s32.totalorder %s32, 1
      %p158 = por %p156, %p157
      %p159 = scmp.ne.s32.totalorder %s150, %s151
      %p160 = scmp.eq.s32.totalorder %s32, 0
      %p161 = por %p159, %p160
      %p162 = scmp.ne.s32.totalorder %s150, %s151
      %p163 = scmp.eq.s32.totalorder %s33, 1
      %p164 = por %p162, %p163
      %p166 = scmp.ne.s32.totalorder %s151, %s165
      %p167 = scmp.eq.s32.totalorder %s33, 0
      %p168 = por %p166, %p167
      %s170 = sadd.s32 %s169, 1
      %p173 = scmp.eq.s32.totalorder %s27, 1
      %p174 = scmp.ne.s32.totalorder %s169, %s171
      %p175 = scmp.eq.s32.totalorder %s27, 0
      %p176 = por %p174, %p175
      %p177 = scmp.ne.s32.totalorder %s169, %s171
      %p178 = scmp.eq.s32.totalorder %s32, 1
      %p179 = por %p177, %p178
      %p180 = scmp.ne.s32.totalorder %s171, %s172
      %p181 = scmp.eq.s32.totalorder %s32, 0
      %p182 = por %p180, %p181
      %p183 = scmp.ne.s32.totalorder %s171, %s172
      %p184 = scmp.eq.s32.totalorder %s33, 1
      %p185 = por %p183, %p184
      %p187 = scmp.ne.s32.totalorder %s172, %s186
      %p188 = scmp.eq.s32.totalorder %s33, 0
      %p189 = por %p187, %p188
      %s191 = sadd.s32 %s190, 1
      %p194 = scmp.eq.s32.totalorder %s27, 1
      %p195 = scmp.ne.s32.totalorder %s190, %s192
      %p196 = scmp.eq.s32.totalorder %s27, 0
      %p197 = por %p195, %p196
      %p198 = scmp.ne.s32.totalorder %s190, %s192
      %p199 = scmp.eq.s32.totalorder %s32, 1
      %p200 = por %p198, %p199
      %p201 = scmp.ne.s32.totalorder %s192, %s193
      %p202 = scmp.eq.s32.totalorder %s32, 0
      %p203 = por %p201, %p202
      %p204 = scmp.ne.s32.totalorder %s192, %s193
      %p205 = scmp.eq.s32.totalorder %s33, 1
      %p206 = por %p204, %p205
      %p208 = scmp.ne.s32.totalorder %s193, %s207
      %p209 = scmp.eq.s32.totalorder %s33, 0
      %p210 = por %p208, %p209
      %s212 = sadd.s32 %s211, 1
      %p215 = scmp.eq.s32.totalorder %s27, 1
      %p216 = scmp.ne.s32.totalorder %s211, %s213
      %p217 = scmp.eq.s32.totalorder %s27, 0
      %p218 = por %p216, %p217
      %p219 = scmp.ne.s32.totalorder %s211, %s213
      %p220 = scmp.eq.s32.totalorder %s32, 1
      %p221 = por %p219, %p220
      %p222 = scmp.ne.s32.totalorder %s213, %s214
      %p223 = scmp.eq.s32.totalorder %s32, 0
      %p224 = por %p222, %p223
      %p225 = scmp.ne.s32.totalorder %s213, %s214
      %p226 = scmp.eq.s32.totalorder %s33, 1
      %p227 = por %p225, %p226
      %p229 = scmp.ne.s32.totalorder %s214, %s228
      %p230 = scmp.eq.s32.totalorder %s33, 0
      %p231 = por %p229, %p230
      %s233 = sadd.s32 %s232, 1
      %p236 = scmp.eq.s32.totalorder %s27, 1
      %p237 = scmp.ne.s32.totalorder %s232, %s234
      %p238 = scmp.eq.s32.totalorder %s27, 0
      %p239 = por %p237, %p238
      %p240 = scmp.ne.s32.totalorder %s232, %s234
      %p241 = scmp.eq.s32.totalorder %s32, 1
      %p242 = por %p240, %p241
      %p243 = scmp.ne.s32.totalorder %s234, %s235
      %p244 = scmp.eq.s32.totalorder %s32, 0
      %p245 = por %p243, %p244
      %p246 = scmp.ne.s32.totalorder %s234, %s235
      %p247 = scmp.eq.s32.totalorder %s33, 1
      %p248 = por %p246, %p247
      %p250 = scmp.ne.s32.totalorder %s235, %s249
      %p251 = scmp.eq.s32.totalorder %s33, 0
      %p252 = por %p250, %p251
      %s254 = sadd.s32 %s253, 1
      %p257 = scmp.eq.s32.totalorder %s27, 1
      %p258 = scmp.ne.s32.totalorder %s253, %s255
      %p259 = scmp.eq.s32.totalorder %s27, 0
      %p260 = por %p258, %p259
      %p261 = scmp.ne.s32.totalorder %s253, %s255
      %p262 = scmp.eq.s32.totalorder %s32, 1
      %p263 = por %p261, %p262
      %p264 = scmp.ne.s32.totalorder %s255, %s256
      %p265 = scmp.eq.s32.totalorder %s32, 0
      %p266 = por %p264, %p265
      %p267 = scmp.ne.s32.totalorder %s255, %s256
      %p268 = scmp.eq.s32.totalorder %s33, 1
      %p269 = por %p267, %p268
      %p271 = scmp.ne.s32.totalorder %s256, %s270
      %p272 = scmp.eq.s32.totalorder %s33, 0
      %p273 = por %p271, %p272
      %s275 = sadd.s32 %s274, 1
      %p278 = scmp.eq.s32.totalorder %s27, 1
      %p279 = scmp.ne.s32.totalorder %s274, %s276
      %p280 = scmp.eq.s32.totalorder %s27, 0
      %p281 = por %p279, %p280
      %p282 = scmp.ne.s32.totalorder %s274, %s276
      %p283 = scmp.eq.s32.totalorder %s32, 1
      %p284 = por %p282, %p283
      %p285 = scmp.ne.s32.totalorder %s276, %s277
      %p286 = scmp.eq.s32.totalorder %s32, 0
      %p287 = por %p285, %p286
      %p288 = scmp.ne.s32.totalorder %s276, %s277
      %p289 = scmp.eq.s32.totalorder %s33, 1
      %p290 = por %p288, %p289
      %p292 = scmp.ne.s32.totalorder %s277, %s291
      %p293 = scmp.eq.s32.totalorder %s33, 0
      %p294 = por %p292, %p293
      %s295 = ssub.s32 %s34, %s46
      %s296 = ssub.s32 %s35, %s42
      %s297 = sor.u32 %s295, %s296
      %p298 = scmp.eq.s32.totalorder %s297, 0
      %s300 = sadd.s32 %s299, 1
      %s301 = scalar_select %p298, %s299, %s300
      %p304 = pneg %p298
      %p305 = scmp.eq.s32.totalorder %s27, 1
      %p306 = por %p304, %p305
      %p307 = scmp.ne.s32.totalorder %s299, %s302
      %p308 = scmp.eq.s32.totalorder %s27, 0
      %p309 = por %p307, %p308
      %p310 = scmp.ne.s32.totalorder %s299, %s302
      %p311 = scmp.eq.s32.totalorder %s32, 1
      %p312 = por %p310, %p311
      %p313 = scmp.ne.s32.totalorder %s302, %s303
      %p314 = scmp.eq.s32.totalorder %s32, 0
      %p315 = por %p313, %p314
      %p316 = scmp.ne.s32.totalorder %s302, %s303
      %p317 = scmp.eq.s32.totalorder %s33, 1
      %p318 = por %p316, %p317
      %p320 = scmp.ne.s32.totalorder %s303, %s319
      %p321 = scmp.eq.s32.totalorder %s33, 0
      %p322 = por %p320, %p321
      %p323 = scmp.le.s32.totalorder 1, %s27
      %p324 = scmp.lt.s32.totalorder %s27, 3
      %p325 = pnand %p323, %p324
      %p326 = pneg %p325
      // Predicated region
      $region9: #{tpu_custom_call.1} parent=5 // pred_check
        _
      $region10: #{tpu_custom_call.1} parent=5 // pred_check_branch
        %328 = sbr.rel (%p325) target = $region12
      $region11: #{tpu_custom_call.1} parent=5 // pred_region
        %s329 = ssub.s32 %s27, 1
        // Predicated region
        $region13: #{tpu_custom_call.1} parent=11 // pred_check
          %p330 = pneg %p140
        $region14: #{tpu_custom_call.1} parent=11 // pred_check_branch
          %332 = sbr.rel (%p330) target = $region16
        $region15: #{tpu_custom_call.1} parent=11 // pred_region
          _
        $region16: #{tpu_custom_call.1} parent=11 // pred_fallthru
          _
        // Predicated region
        $region17: #{tpu_custom_call.1} parent=11 // pred_check
          %p333 = pneg %p161
        $region18: #{tpu_custom_call.1} parent=11 // pred_check_branch
          %335 = sbr.rel (%p333) target = $region20
        $region19: #{tpu_custom_call.1} parent=11 // pred_region
          _
        $region20: #{tpu_custom_call.1} parent=11 // pred_fallthru
          _
        // Predicated region
        $region21: #{tpu_custom_call.1} parent=11 // pred_check
          %p336 = pneg %p182
        $region22: #{tpu_custom_call.1} parent=11 // pred_check_branch
          %338 = sbr.rel (%p336) target = $region24
        $region23: #{tpu_custom_call.1} parent=11 // pred_region
          %s340 = ssub.s32 512, 512
          %341 = vsyncadd [#allocation6], %s340
          %s342 = sshll.u32 [#allocation7], 4
          %s343 = int_to_ptr.vmem [resolvable:$true] %s342
          %348 = dma.hbm_to_vmem [thread:$0]  %s5, 512, %s343, [#allocation6], 64, 64, 4
        $region24: #{tpu_custom_call.1} parent=11 // pred_fallthru
          _
        // Predicated region
        $region25: #{tpu_custom_call.1} parent=11 // pred_check
          %p349 = pneg %p203
        $region26: #{tpu_custom_call.1} parent=11 // pred_check_branch
          %351 = sbr.rel (%p349) target = $region28
        $region27: #{tpu_custom_call.1} parent=11 // pred_region
          %s353 = ssub.s32 256, 256
          %354 = vsyncadd [#allocation9], %s353
          %s355 = sshll.u32 [#allocation8], 4
          %s356 = int_to_ptr.vmem [resolvable:$true] %s355
          %361 = dma.hbm_to_vmem [thread:$0]  %s6, 256, %s356, [#allocation9], 64, 64, 4
        $region28: #{tpu_custom_call.1} parent=11 // pred_fallthru
          _
        // Predicated region
        $region29: #{tpu_custom_call.1} parent=11 // pred_check
          %p362 = pneg %p224
        $region30: #{tpu_custom_call.1} parent=11 // pred_check_branch
          %364 = sbr.rel (%p362) target = $region32
        $region31: #{tpu_custom_call.1} parent=11 // pred_region
          _
        $region32: #{tpu_custom_call.1} parent=11 // pred_fallthru
          _
        // Predicated region
        $region33: #{tpu_custom_call.1} parent=11 // pred_check
          %p365 = pneg %p245
        $region34: #{tpu_custom_call.1} parent=11 // pred_check_branch
          %367 = sbr.rel (%p365) target = $region36
        $region35: #{tpu_custom_call.1} parent=11 // pred_region
          _
        $region36: #{tpu_custom_call.1} parent=11 // pred_fallthru
          _
        // Predicated region
        $region37: #{tpu_custom_call.1} parent=11 // pred_check
          %p368 = pneg %p266
        $region38: #{tpu_custom_call.1} parent=11 // pred_check_branch
          %370 = sbr.rel (%p368) target = $region40
        $region39: #{tpu_custom_call.1} parent=11 // pred_region
          _
        $region40: #{tpu_custom_call.1} parent=11 // pred_fallthru
          _
        // Predicated region
        $region41: #{tpu_custom_call.1} parent=11 // pred_check
          %p371 = pneg %p287
        $region42: #{tpu_custom_call.1} parent=11 // pred_check_branch
          %373 = sbr.rel (%p371) target = $region44
        $region43: #{tpu_custom_call.1} parent=11 // pred_region
          _
        $region44: #{tpu_custom_call.1} parent=11 // pred_fallthru
          _
      $region12: #{tpu_custom_call.1} parent=5 // pred_fallthru
        _
      %p374 = scmp.lt.s32.totalorder %s27, 2
      // Predicated region
      $region45: #{tpu_custom_call.1} parent=5 // pred_check
        %p375 = pneg %p374
      $region46: #{tpu_custom_call.1} parent=5 // pred_check_branch
        %377 = sbr.rel (%p375) target = $region48
      $region47: #{tpu_custom_call.1} parent=5 // pred_region
        // Predicated region
        $region49: #{tpu_custom_call.1} parent=47 // pred_check
          %p378 = pneg %p61
        $region50: #{tpu_custom_call.1} parent=47 // pred_check_branch
          %380 = sbr.rel (%p378) target = $region52
        $region51: #{tpu_custom_call.1} parent=47 // pred_region
          %p381 = scmp.lt.s32.totalorder %s34, 1
          %s382 = scalar_select %p381, %s34, 1
          %p383 = scmp.lt.s32.totalorder %s35, 0
          %s384 = scalar_select %p383, %s35, 0
          %s385 = sadd.s32 %s384, %s382
          %s386 = smul.addr %s385, 8
          %s387 = scalar_lea.vmem %s0, %s386
        $region52: #{tpu_custom_call.1} parent=47 // pred_fallthru
          _
        // Predicated region
        $region53: #{tpu_custom_call.1} parent=47 // pred_check
          %p388 = pneg %p87
        $region54: #{tpu_custom_call.1} parent=47 // pred_check_branch
          %390 = sbr.rel (%p388) target = $region56
        $region55: #{tpu_custom_call.1} parent=47 // pred_region
          %s391 = sand.u32 %s77, 1
          %s392 = scalar_lea.sflag [#allocation3], %s391
          %s393 = sand.u32 %s77, 1
          %s394 = smul.addr %s393, 8
          %s395 = scalar_lea.vmem [#allocation2], %s394
          %s397 = ssub.s32 128, 128
          %398 = vsyncadd %s392, %s397
          %s399 = smul.addr %s34, 128
          %s400 = scalar_lea.hbm %s1, %s399
          %s402 = sshll.u32 %s395, 4
          %s403 = int_to_ptr.vmem [resolvable:$true] %s402
          %405 = dma.hbm_to_vmem [thread:$0]  %s400, 128, %s403, %s392
        $region56: #{tpu_custom_call.1} parent=47 // pred_fallthru
          _
        // Predicated region
        $region57: #{tpu_custom_call.1} parent=47 // pred_check
          %p406 = pneg %p113
        $region58: #{tpu_custom_call.1} parent=47 // pred_check_branch
          %408 = sbr.rel (%p406) target = $region60
        $region59: #{tpu_custom_call.1} parent=47 // pred_region
          %s409 = sand.u32 %s27, 1
          %s410 = scalar_lea.sflag [#allocation6], %s409
          %s411 = sand.u32 %s103, 1
          %s412 = smul.addr %s411, 8
          %s413 = scalar_lea.vmem [#allocation5], %s412
          %s415 = ssub.s32 128, 128
          %416 = vsyncadd %s410, %s415
          %s417 = smul.addr %s34, 128
          %s418 = scalar_lea.hbm %s2, %s417
          %s420 = sshll.u32 %s413, 4
          %s421 = int_to_ptr.vmem [resolvable:$true] %s420
          %423 = dma.hbm_to_vmem [thread:$0]  %s418, 128, %s421, %s410
        $region60: #{tpu_custom_call.1} parent=47 // pred_fallthru
          _
      $region48: #{tpu_custom_call.1} parent=5 // pred_fallthru
        _
      %p424 = scmp.le.s32.totalorder 1, %s27
      %p425 = scmp.lt.s32.totalorder %s27, 3
      %p426 = pnand %p424, %p425
      %p427 = pneg %p426
      // Predicated region
      $region61: #{tpu_custom_call.1} parent=5 // pred_check
        _
      $region62: #{tpu_custom_call.1} parent=5 // pred_check_branch
        %429 = sbr.rel (%p426) target = $region64
      $region63: #{tpu_custom_call.1} parent=5 // pred_region
        %s430 = ssub.s32 %s27, 1
        %s431 = sand.u32 %s80, 1
        %s432 = scalar_lea.sflag [#allocation3], %s431
        %s433 = sand.u32 %s80, 1
        %s434 = smul.addr %s433, 8
        %s435 = scalar_lea.vmem [#allocation2], %s434
        // Predicated region
        $region65: #{tpu_custom_call.1} parent=63 // pred_check
          %p436 = pneg %p93
        $region66: #{tpu_custom_call.1} parent=63 // pred_check_branch
          %438 = sbr.rel (%p436) target = $region68
        $region67: #{tpu_custom_call.1} parent=63 // pred_region
          %439 = dma.done %s432, 128
        $region68: #{tpu_custom_call.1} parent=63 // pred_fallthru
          _
        %s440 = sand.u32 %s32, 1
        %s441 = scalar_lea.sflag [#allocation6], %s440
        %s442 = sand.u32 %s106, 1
        %s443 = smul.addr %s442, 8
        %s444 = scalar_lea.vmem [#allocation5], %s443
        // Predicated region
        $region69: #{tpu_custom_call.1} parent=63 // pred_check
          %p445 = pneg %p119
        $region70: #{tpu_custom_call.1} parent=63 // pred_check_branch
          %447 = sbr.rel (%p445) target = $region72
        $region71: #{tpu_custom_call.1} parent=63 // pred_region
          %448 = dma.done %s441, 128
        $region72: #{tpu_custom_call.1} parent=63 // pred_fallthru
          _
        // Predicated region
        $region73: #{tpu_custom_call.1} parent=63 // pred_check
          %p449 = pneg %p182
        $region74: #{tpu_custom_call.1} parent=63 // pred_check_branch
          %451 = sbr.rel (%p449) target = $region76
        $region75: #{tpu_custom_call.1} parent=63 // pred_region
          %452 = dma.done [#allocation6], 512
        $region76: #{tpu_custom_call.1} parent=63 // pred_fallthru
          _
        // Predicated region
        $region77: #{tpu_custom_call.1} parent=63 // pred_check
          %p453 = pneg %p203
        $region78: #{tpu_custom_call.1} parent=63 // pred_check_branch
          %455 = sbr.rel (%p453) target = $region80
        $region79: #{tpu_custom_call.1} parent=63 // pred_region
          %456 = dma.done [#allocation9], 256
        $region80: #{tpu_custom_call.1} parent=63 // pred_fallthru
          _
        %p457 = scmp.lt.s32.totalorder %s36, 1
        %s458 = scalar_select %p457, %s36, 1
        %p459 = scmp.lt.s32.totalorder %s37, 0
        %s460 = scalar_select %p459, %s37, 0
        %s461 = sadd.s32 %s460, %s458
        %s462 = smul.addr %s461, 8
        %s463 = scalar_lea.vmem %s0, %s462
        %p464 = pneg %p67
        %p465 = pneg %p64
        %s466 = sand.u32 %s80, 1
        %s467 = scalar_lea.sflag [#allocation3], %s466
        %s468 = sand.u32 %s80, 1
        %s469 = smul.addr %s468, 8
        %s470 = scalar_lea.vmem [#allocation2], %s469
        %p471 = pneg %p93
        %p472 = pneg %p90
        %s473 = sand.u32 %s32, 1
        %s474 = scalar_lea.sflag [#allocation6], %s473
        %s475 = sand.u32 %s106, 1
        %s476 = smul.addr %s475, 8
        %s477 = scalar_lea.vmem [#allocation5], %s476
        %p478 = pneg %p119
        %p479 = pneg %p116
        %p480 = pneg %p140
        %p481 = pneg %p137
        %p482 = pneg %p161
        %p483 = pneg %p158
        %p484 = pneg %p182
        %p485 = pneg %p179
        %p486 = pneg %p203
        %p487 = pneg %p200
        %p488 = pneg %p224
        %p489 = pneg %p221
        %p490 = pneg %p245
        %p491 = pneg %p242
        %p492 = pneg %p266
        %p493 = pneg %p263
        %p494 = pneg %p287
        %p495 = pneg %p284
        %p496 = pneg %p315
        %p497 = pneg %p312
        %s498 = sand.u32 %s302, 1
        %s499 = scalar_lea.sflag [#allocation4], %s498
        %s500 = sand.u32 %s302, 1
        %s501 = smul.addr %s500, 8
        %s502 = scalar_lea.vmem [#allocation10], %s501
        %p503 = scmp.lt.s32.totalorder %s36, 1
        %s504 = scalar_select %p503, %s36, 1
        %p505 = scmp.lt.s32.totalorder %s37, 0
        %s506 = scalar_select %p505, %s37, 0
        %s507 = sadd.s32 %s506, %s504
        %s508 = smul.addr %s507, 8
        %s509 = scalar_lea.vmem %s0, %s508
        %v511 = vld [vmem:[%s509] sm:$0xff]
        %v512 = vpack.c.bf16 %v511, %v511
        %v513 = vld [vmem:[%s435] sm:$0xff]
        %v514 = vpack.c.bf16 %v513, %v513
        %v515 = vld [vmem:[%s444] sm:$0xff]
        %v516 = vpack.c.bf16 %v515, %v515
        %v517 = vld [vmem:[%s3] sm:$0xf]
        %v518 = vld [vmem:[%s3 + $0x4] sm:$0xf]
        %v519 = vld [vmem:[%s3 + $0x8] sm:$0xf]
        %v520 = vld [vmem:[%s3 + $0xc] sm:$0xf]
        %v521 = vld [vmem:[%s10] sm:$0x1]
        %v523 = vlaneseq
        %v524 = vshrl.u32 %v523, 7
        %v525 = vsub.s32 0, %v524
        %v526 = vrot.slane %v521, %v525
        %v532 = vunpack.c.l.b16 %v517
        %v533 = vunpack.c.l.b16 %v518
        %v534 = vunpack.c.l.b16 %v519
        %v535 = vunpack.c.l.b16 %v520
        %v536 = vpack.c.b16 %v533, %v532
        %v537 = vpack.c.b16 %v535, %v534
        %vm540 = vcmask 261120
        %v542 = vsel %vm540, %v512, 0
        %544 = vmatprep.subr.bf16.mxu0 0
        %545 = vmatpush1.bf16.msra.mxu0 0
        %546 = vmatprep.subr.bf16.mxu0 0
        %547 = vmatpush1.bf16.msra.mxu0 0
        %548 = vmatprep.subr.bf16.mxu0 0
        %549 = vmatpush1.bf16.msra.mxu0 0
        %550 = vmatprep.subr.bf16.mxu0 0
        %551 = vmatpush1.bf16.msra.mxu0 0
        %552 = vmatprep.subr.bf16.mxu0 0
        %553 = vmatpush1.bf16.msra.mxu0 0
        %554 = vmatprep.subr.bf16.mxu0 0
        %555 = vmatpush1.bf16.msra.mxu0 0
        %556 = vmatprep.subr.bf16.mxu0 0
        %557 = vmatpush1.bf16.msra.mxu0 %v537
        %558 = vmatprep.subr.bf16.mxu0 0
        %559 = vmatpush1.bf16.msra.mxu0 %v536
        %560 = vmatprep.subr.bf16.mxu0 0
        %561 = vmatpush2.bf16.msra.mxu0 0
        %562 = vmatprep.subr.bf16.mxu0 0
        %563 = vmatpush2.bf16.msra.mxu0 0
        %564 = vmatprep.subr.bf16.mxu0 0
        %565 = vmatpush2.bf16.msra.mxu0 0
        %566 = vmatprep.subr.bf16.mxu0 0
        %567 = vmatpush2.bf16.msra.mxu0 0
        %568 = vmatprep.subr.bf16.mxu0 0
        %569 = vmatpush2.bf16.msra.mxu0 0
        %570 = vmatprep.subr.bf16.mxu0 0
        %571 = vmatpush2.bf16.msra.mxu0 0
        %572 = vmatprep.subr.bf16.mxu0 0
        %573 = vmatpush2.bf16.msra.mxu0 0
        %574 = vmatprep.subr.bf16.mxu0 0
        %575 = vmatpush2.bf16.msra.mxu0 0
        %576 = vmatprep.mubr.bf16.mxu0 0
        %577 = vmatmul.mubr.bf16.gmra.mxu0 %v542
        %v578 = vpop.f32.mrf.mxu0
        %v579 = vadd.f32 %v526, %v578
        %v580 = vpop.f32.mrf.mxu0
        %v581 = vpop.f32.mrf.mxu0
        %v582 = vpop.f32.mrf.mxu0
        %583 = vdwg.mxu0
        %v584 = vmul.f32 %v579, 0.35355338
        %v585 = vld [vmem:[%s4] sm:$0xf]
        %v586 = vld [vmem:[%s4 + $0x4] sm:$0xf]
        %v587 = vld [vmem:[%s4 + $0x8] sm:$0xf]
        %v588 = vld [vmem:[%s4 + $0xc] sm:$0xf]
        %v589 = vld [vmem:[%s8] sm:$0x1]
        %v591 = vlaneseq
        %v592 = vshrl.u32 %v591, 7
        %v593 = vsub.s32 0, %v592
        %v594 = vrot.slane %v589, %v593
        %v600 = vunpack.c.l.b16 %v585
        %v601 = vunpack.c.l.b16 %v586
        %v602 = vunpack.c.l.b16 %v587
        %v603 = vunpack.c.l.b16 %v588
        %v604 = vpack.c.b16 %v601, %v600
        %v605 = vpack.c.b16 %v603, %v602
        %v609 = vsel %vm540, %v514, 0
        %611 = vmatprep.subr.bf16.mxu0 0
        %612 = vmatpush1.bf16.msra.mxu0 0
        %613 = vmatprep.subr.bf16.mxu0 0
        %614 = vmatpush1.bf16.msra.mxu0 0
        %615 = vmatprep.subr.bf16.mxu0 0
        %616 = vmatpush1.bf16.msra.mxu0 0
        %617 = vmatprep.subr.bf16.mxu0 0
        %618 = vmatpush1.bf16.msra.mxu0 0
        %619 = vmatprep.subr.bf16.mxu0 0
        %620 = vmatpush1.bf16.msra.mxu0 0
        %621 = vmatprep.subr.bf16.mxu0 0
        %622 = vmatpush1.bf16.msra.mxu0 0
        %623 = vmatprep.subr.bf16.mxu0 0
        %624 = vmatpush1.bf16.msra.mxu0 %v605
        %625 = vmatprep.subr.bf16.mxu0 0
        %626 = vmatpush1.bf16.msra.mxu0 %v604
        %627 = vmatprep.subr.bf16.mxu0 0
        %628 = vmatpush2.bf16.msra.mxu0 0
        %629 = vmatprep.subr.bf16.mxu0 0
        %630 = vmatpush2.bf16.msra.mxu0 0
        %631 = vmatprep.subr.bf16.mxu0 0
        %632 = vmatpush2.bf16.msra.mxu0 0
        %633 = vmatprep.subr.bf16.mxu0 0
        %634 = vmatpush2.bf16.msra.mxu0 0
        %635 = vmatprep.subr.bf16.mxu0 0
        %636 = vmatpush2.bf16.msra.mxu0 0
        %637 = vmatprep.subr.bf16.mxu0 0
        %638 = vmatpush2.bf16.msra.mxu0 0
        %639 = vmatprep.subr.bf16.mxu0 0
        %640 = vmatpush2.bf16.msra.mxu0 0
        %641 = vmatprep.subr.bf16.mxu0 0
        %642 = vmatpush2.bf16.msra.mxu0 0
        %643 = vmatprep.mubr.bf16.mxu0 0
        %644 = vmatmul.mubr.bf16.gmra.mxu0 %v609
        %v645 = vpop.f32.mrf.mxu0
        %v646 = vadd.f32 %v594, %v645
        %v647 = vpop.f32.mrf.mxu0
        %v648 = vpop.f32.mrf.mxu0
        %v649 = vpop.f32.mrf.mxu0
        %650 = vdwg.mxu0
        %v651 = vpack.c.bf16 %v584, %v584
        %653 = vrot.lane.b32.xlu0 %v651, 120
        %v654 = vpop.permute.xlu0 %653
        %655 = vrot.lane.b32.xlu0 %v651, 112
        %v656 = vpop.permute.xlu0 %655
        %657 = vrot.lane.b32.xlu0 %v651, 104
        %v658 = vpop.permute.xlu0 %657
        %v659 = vpack.c.bf16 %v646, %v646
        %661 = vrot.lane.b32.xlu0 %v659, 120
        %v662 = vpop.permute.xlu0 %661
        %663 = vrot.lane.b32.xlu0 %v659, 112
        %v664 = vpop.permute.xlu0 %663
        %665 = vrot.lane.b32.xlu0 %v659, 104
        %v666 = vpop.permute.xlu0 %665
        %vm667 = vcmask 64512
        %v669 = vsel %vm667, %v651, 0
        %v672 = vsel %vm667, %v659, 0
        %674 = vmatprep.subr.bf16.mxu0 0
        %675 = vmatpush1.bf16.xpose.msra.mxu0 0
        %676 = vmatprep.subr.bf16.mxu0 0
        %677 = vmatpush1.bf16.xpose.msra.mxu0 0
        %678 = vmatprep.subr.bf16.mxu0 0
        %679 = vmatpush1.bf16.xpose.msra.mxu0 0
        %680 = vmatprep.subr.bf16.mxu0 0
        %681 = vmatpush1.bf16.xpose.msra.mxu0 0
        %682 = vmatprep.subr.bf16.mxu0 0
        %683 = vmatpush1.bf16.xpose.msra.mxu0 0
        %684 = vmatprep.subr.bf16.mxu0 0
        %685 = vmatpush1.bf16.xpose.msra.mxu0 0
        %686 = vmatprep.subr.bf16.mxu0 0
        %687 = vmatpush1.bf16.xpose.msra.mxu0 0
        %688 = vmatprep.subr.bf16.mxu0 0
        %689 = vmatpush1.bf16.xpose.msra.mxu0 %v672
        %690 = vmatprep.subr.bf16.mxu0 0
        %691 = vmatpush2.bf16.xpose.msra.mxu0 0
        %692 = vmatprep.subr.bf16.mxu0 0
        %693 = vmatpush2.bf16.xpose.msra.mxu0 0
        %694 = vmatprep.subr.bf16.mxu0 0
        %695 = vmatpush2.bf16.xpose.msra.mxu0 0
        %696 = vmatprep.subr.bf16.mxu0 0
        %697 = vmatpush2.bf16.xpose.msra.mxu0 0
        %698 = vmatprep.subr.bf16.mxu0 0
        %699 = vmatpush2.bf16.xpose.msra.mxu0 0
        %700 = vmatprep.subr.bf16.mxu0 0
        %701 = vmatpush2.bf16.xpose.msra.mxu0 0
        %702 = vmatprep.subr.bf16.mxu0 0
        %703 = vmatpush2.bf16.xpose.msra.mxu0 0
        %704 = vmatprep.subr.bf16.mxu0 0
        %705 = vmatpush2.bf16.xpose.msra.mxu0 0
        %706 = vmatprep.mubr.bf16.mxu0 0
        %707 = vmatmul.mubr.bf16.gmra.mxu0 %v669
        %v708 = vpop.f32.mrf.mxu0
        %v709 = vadd.f32 0.0, %v708
        %v710 = vpop.f32.mrf.mxu0
        %v711 = vpop.f32.mrf.mxu0
        %v712 = vpop.f32.mrf.mxu0
        %713 = vdwg.mxu0
        %v715 = vsel %vm667, %v654, 0
        %v718 = vsel %vm667, %v662, 0
        %720 = vmatprep.subr.bf16.mxu0 0
        %721 = vmatpush1.bf16.xpose.msra.mxu0 0
        %722 = vmatprep.subr.bf16.mxu0 0
        %723 = vmatpush1.bf16.xpose.msra.mxu0 0
        %724 = vmatprep.subr.bf16.mxu0 0
        %725 = vmatpush1.bf16.xpose.msra.mxu0 0
        %726 = vmatprep.subr.bf16.mxu0 0
        %727 = vmatpush1.bf16.xpose.msra.mxu0 0
        %728 = vmatprep.subr.bf16.mxu0 0
        %729 = vmatpush1.bf16.xpose.msra.mxu0 0
        %730 = vmatprep.subr.bf16.mxu0 0
        %731 = vmatpush1.bf16.xpose.msra.mxu0 0
        %732 = vmatprep.subr.bf16.mxu0 0
        %733 = vmatpush1.bf16.xpose.msra.mxu0 0
        %734 = vmatprep.subr.bf16.mxu0 0
        %735 = vmatpush1.bf16.xpose.msra.mxu0 %v718
        %736 = vmatprep.subr.bf16.mxu0 0
        %737 = vmatpush2.bf16.xpose.msra.mxu0 0
        %738 = vmatprep.subr.bf16.mxu0 0
        %739 = vmatpush2.bf16.xpose.msra.mxu0 0
        %740 = vmatprep.subr.bf16.mxu0 0
        %741 = vmatpush2.bf16.xpose.msra.mxu0 0
        %742 = vmatprep.subr.bf16.mxu0 0
        %743 = vmatpush2.bf16.xpose.msra.mxu0 0
        %744 = vmatprep.subr.bf16.mxu0 0
        %745 = vmatpush2.bf16.xpose.msra.mxu0 0
        %746 = vmatprep.subr.bf16.mxu0 0
        %747 = vmatpush2.bf16.xpose.msra.mxu0 0
        %748 = vmatprep.subr.bf16.mxu0 0
        %749 = vmatpush2.bf16.xpose.msra.mxu0 0
        %750 = vmatprep.subr.bf16.mxu0 0
        %751 = vmatpush2.bf16.xpose.msra.mxu0 0
        %752 = vmatprep.mubr.bf16.mxu0 0
        %753 = vmatmul.mubr.bf16.gmra.mxu0 %v715
        %v754 = vpop.f32.mrf.mxu0
        %v755 = vadd.f32 0.0, %v754
        %v756 = vpop.f32.mrf.mxu0
        %v757 = vpop.f32.mrf.mxu0
        %v758 = vpop.f32.mrf.mxu0
        %759 = vdwg.mxu0
        %v761 = vsel %vm667, %v656, 0
        %v764 = vsel %vm667, %v664, 0
        %766 = vmatprep.subr.bf16.mxu0 0
        %767 = vmatpush1.bf16.xpose.msra.mxu0 0
        %768 = vmatprep.subr.bf16.mxu0 0
        %769 = vmatpush1.bf16.xpose.msra.mxu0 0
        %770 = vmatprep.subr.bf16.mxu0 0
        %771 = vmatpush1.bf16.xpose.msra.mxu0 0
        %772 = vmatprep.subr.bf16.mxu0 0
        %773 = vmatpush1.bf16.xpose.msra.mxu0 0
        %774 = vmatprep.subr.bf16.mxu0 0
        %775 = vmatpush1.bf16.xpose.msra.mxu0 0
        %776 = vmatprep.subr.bf16.mxu0 0
        %777 = vmatpush1.bf16.xpose.msra.mxu0 0
        %778 = vmatprep.subr.bf16.mxu0 0
        %779 = vmatpush1.bf16.xpose.msra.mxu0 0
        %780 = vmatprep.subr.bf16.mxu0 0
        %781 = vmatpush1.bf16.xpose.msra.mxu0 %v764
        %782 = vmatprep.subr.bf16.mxu0 0
        %783 = vmatpush2.bf16.xpose.msra.mxu0 0
        %784 = vmatprep.subr.bf16.mxu0 0
        %785 = vmatpush2.bf16.xpose.msra.mxu0 0
        %786 = vmatprep.subr.bf16.mxu0 0
        %787 = vmatpush2.bf16.xpose.msra.mxu0 0
        %788 = vmatprep.subr.bf16.mxu0 0
        %789 = vmatpush2.bf16.xpose.msra.mxu0 0
        %790 = vmatprep.subr.bf16.mxu0 0
        %791 = vmatpush2.bf16.xpose.msra.mxu0 0
        %792 = vmatprep.subr.bf16.mxu0 0
        %793 = vmatpush2.bf16.xpose.msra.mxu0 0
        %794 = vmatprep.subr.bf16.mxu0 0
        %795 = vmatpush2.bf16.xpose.msra.mxu0 0
        %796 = vmatprep.subr.bf16.mxu0 0
        %797 = vmatpush2.bf16.xpose.msra.mxu0 0
        %798 = vmatprep.mubr.bf16.mxu0 0
        %799 = vmatmul.mubr.bf16.gmra.mxu0 %v761
        %v800 = vpop.f32.mrf.mxu0
        %v801 = vadd.f32 0.0, %v800
        %v802 = vpop.f32.mrf.mxu0
        %v803 = vpop.f32.mrf.mxu0
        %v804 = vpop.f32.mrf.mxu0
        %805 = vdwg.mxu0
        %v807 = vsel %vm667, %v658, 0
        %v810 = vsel %vm667, %v666, 0
        %812 = vmatprep.subr.bf16.mxu0 0
        %813 = vmatpush1.bf16.xpose.msra.mxu0 0
        %814 = vmatprep.subr.bf16.mxu0 0
        %815 = vmatpush1.bf16.xpose.msra.mxu0 0
        %816 = vmatprep.subr.bf16.mxu0 0
        %817 = vmatpush1.bf16.xpose.msra.mxu0 0
        %818 = vmatprep.subr.bf16.mxu0 0
        %819 = vmatpush1.bf16.xpose.msra.mxu0 0
        %820 = vmatprep.subr.bf16.mxu0 0
        %821 = vmatpush1.bf16.xpose.msra.mxu0 0
        %822 = vmatprep.subr.bf16.mxu0 0
        %823 = vmatpush1.bf16.xpose.msra.mxu0 0
        %824 = vmatprep.subr.bf16.mxu0 0
        %825 = vmatpush1.bf16.xpose.msra.mxu0 0
        %826 = vmatprep.subr.bf16.mxu0 0
        %827 = vmatpush1.bf16.xpose.msra.mxu0 %v810
        %828 = vmatprep.subr.bf16.mxu0 0
        %829 = vmatpush2.bf16.xpose.msra.mxu0 0
        %830 = vmatprep.subr.bf16.mxu0 0
        %831 = vmatpush2.bf16.xpose.msra.mxu0 0
        %832 = vmatprep.subr.bf16.mxu0 0
        %833 = vmatpush2.bf16.xpose.msra.mxu0 0
        %834 = vmatprep.subr.bf16.mxu0 0
        %835 = vmatpush2.bf16.xpose.msra.mxu0 0
        %836 = vmatprep.subr.bf16.mxu0 0
        %837 = vmatpush2.bf16.xpose.msra.mxu0 0
        %838 = vmatprep.subr.bf16.mxu0 0
        %839 = vmatpush2.bf16.xpose.msra.mxu0 0
        %840 = vmatprep.subr.bf16.mxu0 0
        %841 = vmatpush2.bf16.xpose.msra.mxu0 0
        %842 = vmatprep.subr.bf16.mxu0 0
        %843 = vmatpush2.bf16.xpose.msra.mxu0 0
        %844 = vmatprep.mubr.bf16.mxu0 0
        %845 = vmatmul.mubr.bf16.gmra.mxu0 %v807
        %v846 = vpop.f32.mrf.mxu0
        %v847 = vadd.f32 0.0, %v846
        %v848 = vpop.f32.mrf.mxu0
        %v849 = vpop.f32.mrf.mxu0
        %v850 = vpop.f32.mrf.mxu0
        %851 = vdwg.mxu0
        %v852 = vsel %vm667, %v709, -inf
        %853 = vmax.xlane.f32.xlu0 %v852
        %v854 = vpop.xlane.xlu0 %853
        %v855 = vsel %vm667, %v755, -inf
        %856 = vmax.xlane.f32.xlu0 %v855
        %v857 = vpop.xlane.xlu0 %856
        %v858 = vsel %vm667, %v801, -inf
        %859 = vmax.xlane.f32.xlu0 %v858
        %v860 = vpop.xlane.xlu0 %859
        %v861 = vsel %vm667, %v847, -inf
        %862 = vmax.xlane.f32.xlu0 %v861
        %v863 = vpop.xlane.xlu0 %862
        %v864 = vsub.f32 -inf, %v854
        %v865 = vsub.f32 -inf, %v857
        %v866 = vsub.f32 -inf, %v860
        %v867 = vsub.f32 -inf, %v863
        %v868 = vmul.f32 %v864, 1.442695
        %v869 = vpow.pop %v868
        %v870 = vmul.f32 %v865, 1.442695
        %v871 = vpow.pop %v870
        %v872 = vmul.f32 %v866, 1.442695
        %v873 = vpow.pop %v872
        %v874 = vmul.f32 %v867, 1.442695
        %v875 = vpow.pop %v874
        %v876 = vsub.f32 %v709, %v854
        %v877 = vsub.f32 %v755, %v857
        %v878 = vsub.f32 %v801, %v860
        %v879 = vsub.f32 %v847, %v863
        %v880 = vmul.f32 %v876, 1.442695
        %v881 = vpow.pop %v880
        %v882 = vmul.f32 %v877, 1.442695
        %v883 = vpow.pop %v882
        %v884 = vmul.f32 %v878, 1.442695
        %v885 = vpow.pop %v884
        %v886 = vmul.f32 %v879, 1.442695
        %v887 = vpow.pop %v886
        %v888 = vmul.f32 %v869, 0.0
        %v889 = vmul.f32 %v871, 0.0
        %v890 = vmul.f32 %v873, 0.0
        %v891 = vmul.f32 %v875, 0.0
        %v892 = vsel %vm667, %v881, 0.0
        %893 = vadd.xlane.f32.xlu0 %v892
        %v894 = vpop.xlane.xlu0 %893
        %v895 = vsel %vm667, %v883, 0.0
        %896 = vadd.xlane.f32.xlu0 %v895
        %v897 = vpop.xlane.xlu0 %896
        %v898 = vsel %vm667, %v885, 0.0
        %899 = vadd.xlane.f32.xlu0 %v898
        %v900 = vpop.xlane.xlu0 %899
        %v901 = vsel %vm667, %v887, 0.0
        %902 = vadd.xlane.f32.xlu0 %v901
        %v903 = vpop.xlane.xlu0 %902
        %v904 = vadd.f32 %v888, %v894
        %v905 = vadd.f32 %v889, %v897
        %v906 = vadd.f32 %v890, %v900
        %v907 = vadd.f32 %v891, %v903
        %v908 = vpack.c.bf16 %v881, %v881
        %v909 = vpack.c.bf16 %v883, %v883
        %v910 = vpack.c.bf16 %v885, %v885
        %v911 = vpack.c.bf16 %v887, %v887
        %912 = vrot.lane.b32.xlu0 %v659, 96
        %v913 = vpop.permute.xlu0 %912
        %v915 = vsel %vm667, %v908, 0
        %vm917 = vcmask 1043456
        %v919 = vsel %vm917, %v913, 0
        %921 = vmatprep.subr.bf16.mxu0 0
        %922 = vmatpush1.bf16.msra.mxu0 0
        %923 = vmatprep.subr.bf16.mxu0 0
        %924 = vmatpush1.bf16.msra.mxu0 0
        %925 = vmatprep.subr.bf16.mxu0 0
        %926 = vmatpush1.bf16.msra.mxu0 0
        %927 = vmatprep.subr.bf16.mxu0 0
        %928 = vmatpush1.bf16.msra.mxu0 0
        %929 = vmatprep.subr.bf16.mxu0 0
        %930 = vmatpush1.bf16.msra.mxu0 0
        %931 = vmatprep.subr.bf16.mxu0 0
        %932 = vmatpush1.bf16.msra.mxu0 0
        %933 = vmatprep.subr.bf16.mxu0 0
        %934 = vmatpush1.bf16.msra.mxu0 0
        %935 = vmatprep.subr.bf16.mxu0 0
        %936 = vmatpush1.bf16.msra.mxu0 %v919
        %937 = vmatprep.subr.bf16.mxu0 0
        %938 = vmatpush2.bf16.msra.mxu0 0
        %939 = vmatprep.subr.bf16.mxu0 0
        %940 = vmatpush2.bf16.msra.mxu0 0
        %941 = vmatprep.subr.bf16.mxu0 0
        %942 = vmatpush2.bf16.msra.mxu0 0
        %943 = vmatprep.subr.bf16.mxu0 0
        %944 = vmatpush2.bf16.msra.mxu0 0
        %945 = vmatprep.subr.bf16.mxu0 0
        %946 = vmatpush2.bf16.msra.mxu0 0
        %947 = vmatprep.subr.bf16.mxu0 0
        %948 = vmatpush2.bf16.msra.mxu0 0
        %949 = vmatprep.subr.bf16.mxu0 0
        %950 = vmatpush2.bf16.msra.mxu0 0
        %951 = vmatprep.subr.bf16.mxu0 0
        %952 = vmatpush2.bf16.msra.mxu0 0
        %953 = vmatprep.mubr.bf16.mxu0 0
        %954 = vmatmul.mubr.bf16.gmra.mxu0 %v915
        %v955 = vpop.f32.mrf.mxu0
        %v956 = vadd.f32 0.0, %v955
        %v957 = vpop.f32.mrf.mxu0
        %v958 = vpop.f32.mrf.mxu0
        %v959 = vpop.f32.mrf.mxu0
        %960 = vdwg.mxu0
        %961 = vrot.lane.b32.xlu0 %v662, 96
        %v962 = vpop.permute.xlu0 %961
        %v964 = vsel %vm667, %v909, 0
        %v967 = vsel %vm917, %v962, 0
        %969 = vmatprep.subr.bf16.mxu0 0
        %970 = vmatpush1.bf16.msra.mxu0 0
        %971 = vmatprep.subr.bf16.mxu0 0
        %972 = vmatpush1.bf16.msra.mxu0 0
        %973 = vmatprep.subr.bf16.mxu0 0
        %974 = vmatpush1.bf16.msra.mxu0 0
        %975 = vmatprep.subr.bf16.mxu0 0
        %976 = vmatpush1.bf16.msra.mxu0 0
        %977 = vmatprep.subr.bf16.mxu0 0
        %978 = vmatpush1.bf16.msra.mxu0 0
        %979 = vmatprep.subr.bf16.mxu0 0
        %980 = vmatpush1.bf16.msra.mxu0 0
        %981 = vmatprep.subr.bf16.mxu0 0
        %982 = vmatpush1.bf16.msra.mxu0 0
        %983 = vmatprep.subr.bf16.mxu0 0
        %984 = vmatpush1.bf16.msra.mxu0 %v967
        %985 = vmatprep.subr.bf16.mxu0 0
        %986 = vmatpush2.bf16.msra.mxu0 0
        %987 = vmatprep.subr.bf16.mxu0 0
        %988 = vmatpush2.bf16.msra.mxu0 0
        %989 = vmatprep.subr.bf16.mxu0 0
        %990 = vmatpush2.bf16.msra.mxu0 0
        %991 = vmatprep.subr.bf16.mxu0 0
        %992 = vmatpush2.bf16.msra.mxu0 0
        %993 = vmatprep.subr.bf16.mxu0 0
        %994 = vmatpush2.bf16.msra.mxu0 0
        %995 = vmatprep.subr.bf16.mxu0 0
        %996 = vmatpush2.bf16.msra.mxu0 0
        %997 = vmatprep.subr.bf16.mxu0 0
        %998 = vmatpush2.bf16.msra.mxu0 0
        %999 = vmatprep.subr.bf16.mxu0 0
        %1000 = vmatpush2.bf16.msra.mxu0 0
        %1001 = vmatprep.mubr.bf16.mxu0 0
        %1002 = vmatmul.mubr.bf16.gmra.mxu0 %v964
        %v1003 = vpop.f32.mrf.mxu0
        %v1004 = vadd.f32 0.0, %v1003
        %v1005 = vpop.f32.mrf.mxu0
        %v1006 = vpop.f32.mrf.mxu0
        %v1007 = vpop.f32.mrf.mxu0
        %1008 = vdwg.mxu0
        %1009 = vrot.lane.b32.xlu0 %v664, 96
        %v1010 = vpop.permute.xlu0 %1009
        %v1012 = vsel %vm667, %v910, 0
        %v1015 = vsel %vm917, %v1010, 0
        %1017 = vmatprep.subr.bf16.mxu0 0
        %1018 = vmatpush1.bf16.msra.mxu0 0
        %1019 = vmatprep.subr.bf16.mxu0 0
        %1020 = vmatpush1.bf16.msra.mxu0 0
        %1021 = vmatprep.subr.bf16.mxu0 0
        %1022 = vmatpush1.bf16.msra.mxu0 0
        %1023 = vmatprep.subr.bf16.mxu0 0
        %1024 = vmatpush1.bf16.msra.mxu0 0
        %1025 = vmatprep.subr.bf16.mxu0 0
        %1026 = vmatpush1.bf16.msra.mxu0 0
        %1027 = vmatprep.subr.bf16.mxu0 0
        %1028 = vmatpush1.bf16.msra.mxu0 0
        %1029 = vmatprep.subr.bf16.mxu0 0
        %1030 = vmatpush1.bf16.msra.mxu0 0
        %1031 = vmatprep.subr.bf16.mxu0 0
        %1032 = vmatpush1.bf16.msra.mxu0 %v1015
        %1033 = vmatprep.subr.bf16.mxu0 0
        %1034 = vmatpush2.bf16.msra.mxu0 0
        %1035 = vmatprep.subr.bf16.mxu0 0
        %1036 = vmatpush2.bf16.msra.mxu0 0
        %1037 = vmatprep.subr.bf16.mxu0 0
        %1038 = vmatpush2.bf16.msra.mxu0 0
        %1039 = vmatprep.subr.bf16.mxu0 0
        %1040 = vmatpush2.bf16.msra.mxu0 0
        %1041 = vmatprep.subr.bf16.mxu0 0
        %1042 = vmatpush2.bf16.msra.mxu0 0
        %1043 = vmatprep.subr.bf16.mxu0 0
        %1044 = vmatpush2.bf16.msra.mxu0 0
        %1045 = vmatprep.subr.bf16.mxu0 0
        %1046 = vmatpush2.bf16.msra.mxu0 0
        %1047 = vmatprep.subr.bf16.mxu0 0
        %1048 = vmatpush2.bf16.msra.mxu0 0
        %1049 = vmatprep.mubr.bf16.mxu0 0
        %1050 = vmatmul.mubr.bf16.gmra.mxu0 %v1012
        %v1051 = vpop.f32.mrf.mxu0
        %v1052 = vadd.f32 0.0, %v1051
        %v1053 = vpop.f32.mrf.mxu0
        %v1054 = vpop.f32.mrf.mxu0
        %v1055 = vpop.f32.mrf.mxu0
        %1056 = vdwg.mxu0
        %1057 = vrot.lane.b32.xlu0 %v666, 96
        %v1058 = vpop.permute.xlu0 %1057
        %v1060 = vsel %vm667, %v911, 0
        %v1063 = vsel %vm917, %v1058, 0
        %1065 = vmatprep.subr.bf16.mxu0 0
        %1066 = vmatpush1.bf16.msra.mxu0 0
        %1067 = vmatprep.subr.bf16.mxu0 0
        %1068 = vmatpush1.bf16.msra.mxu0 0
        %1069 = vmatprep.subr.bf16.mxu0 0
        %1070 = vmatpush1.bf16.msra.mxu0 0
        %1071 = vmatprep.subr.bf16.mxu0 0
        %1072 = vmatpush1.bf16.msra.mxu0 0
        %1073 = vmatprep.subr.bf16.mxu0 0
        %1074 = vmatpush1.bf16.msra.mxu0 0
        %1075 = vmatprep.subr.bf16.mxu0 0
        %1076 = vmatpush1.bf16.msra.mxu0 0
        %1077 = vmatprep.subr.bf16.mxu0 0
        %1078 = vmatpush1.bf16.msra.mxu0 0
        %1079 = vmatprep.subr.bf16.mxu0 0
        %1080 = vmatpush1.bf16.msra.mxu0 %v1063
        %1081 = vmatprep.subr.bf16.mxu0 0
        %1082 = vmatpush2.bf16.msra.mxu0 0
        %1083 = vmatprep.subr.bf16.mxu0 0
        %1084 = vmatpush2.bf16.msra.mxu0 0
        %1085 = vmatprep.subr.bf16.mxu0 0
        %1086 = vmatpush2.bf16.msra.mxu0 0
        %1087 = vmatprep.subr.bf16.mxu0 0
        %1088 = vmatpush2.bf16.msra.mxu0 0
        %1089 = vmatprep.subr.bf16.mxu0 0
        %1090 = vmatpush2.bf16.msra.mxu0 0
        %1091 = vmatprep.subr.bf16.mxu0 0
        %1092 = vmatpush2.bf16.msra.mxu0 0
        %1093 = vmatprep.subr.bf16.mxu0 0
        %1094 = vmatpush2.bf16.msra.mxu0 0
        %1095 = vmatprep.subr.bf16.mxu0 0
        %1096 = vmatpush2.bf16.msra.mxu0 0
        %1097 = vmatprep.mubr.bf16.mxu0 0
        %1098 = vmatmul.mubr.bf16.gmra.mxu0 %v1060
        %v1099 = vpop.f32.mrf.mxu0
        %v1100 = vadd.f32 0.0, %v1099
        %v1101 = vpop.f32.mrf.mxu0
        %v1102 = vpop.f32.mrf.mxu0
        %v1103 = vpop.f32.mrf.mxu0
        %1104 = vdwg.mxu0
        %v1105 = vadd.f32 %v888, %v956
        %v1106 = vadd.f32 %v889, %v1004
        %v1107 = vadd.f32 %v890, %v1052
        %v1108 = vadd.f32 %v891, %v1100
        %v1109 = vrcp.pop %v904
        %v1110 = vrcp.pop %v905
        %v1111 = vrcp.pop %v906
        %v1112 = vrcp.pop %v907
        %v1113 = vmul.f32 %v1105, %v1109
        %v1114 = vmul.f32 %v1106, %v1110
        %v1115 = vmul.f32 %v1107, %v1111
        %v1116 = vmul.f32 %v1108, %v1112
        %1118 = vrot.lane.b32.xlu0 %v1114, 8
        %v1119 = vpop.permute.xlu0 %1118
        %1122 = vrot.lane.b32.xlu0 %v1115, 16
        %v1123 = vpop.permute.xlu0 %1122
        %1126 = vrot.lane.b32.xlu0 %v1116, 24
        %v1127 = vpop.permute.xlu0 %1126
        %v1129 = vsel %vm667, %v1113, %v1119
        %vm1130 = vcmask 130048
        %v1131 = vsel %vm1130, %v1129, %v1123
        %vm1132 = vcmask 195584
        %v1133 = vsel %vm1132, %v1131, %v1127
        %v1134 = vpack.c.bf16 %v1133, %v1133
        %v1135 = vld [vmem:[#allocation7] sm:$0xf]
        %v1136 = vld [vmem:[#allocation7 + $0x4] sm:$0xf]
        %v1137 = vld [vmem:[#allocation7 + $0x8] sm:$0xf]
        %v1138 = vld [vmem:[#allocation7 + $0xc] sm:$0xf]
        %s1139 = scalar_lea.vmem %s10, 2
        %v1140 = vld [vmem:[%s1139] sm:$0x1]
        %v1142 = vlaneseq
        %v1143 = vshrl.u32 %v1142, 7
        %v1144 = vsub.s32 0, %v1143
        %v1145 = vrot.slane %v1140, %v1144
        %v1151 = vunpack.c.l.b16 %v1135
        %v1152 = vunpack.c.l.b16 %v1136
        %v1153 = vunpack.c.l.b16 %v1137
        %v1154 = vunpack.c.l.b16 %v1138
        %v1155 = vpack.c.b16 %v1152, %v1151
        %v1156 = vpack.c.b16 %v1154, %v1153
        %v1160 = vsel %vm540, %v1134, 0
        %1162 = vmatprep.subr.bf16.mxu0 0
        %1163 = vmatpush1.bf16.msra.mxu0 0
        %1164 = vmatprep.subr.bf16.mxu0 0
        %1165 = vmatpush1.bf16.msra.mxu0 0
        %1166 = vmatprep.subr.bf16.mxu0 0
        %1167 = vmatpush1.bf16.msra.mxu0 0
        %1168 = vmatprep.subr.bf16.mxu0 0
        %1169 = vmatpush1.bf16.msra.mxu0 0
        %1170 = vmatprep.subr.bf16.mxu0 0
        %1171 = vmatpush1.bf16.msra.mxu0 0
        %1172 = vmatprep.subr.bf16.mxu0 0
        %1173 = vmatpush1.bf16.msra.mxu0 0
        %1174 = vmatprep.subr.bf16.mxu0 0
        %1175 = vmatpush1.bf16.msra.mxu0 %v1156
        %1176 = vmatprep.subr.bf16.mxu0 0
        %1177 = vmatpush1.bf16.msra.mxu0 %v1155
        %1178 = vmatprep.subr.bf16.mxu0 0
        %1179 = vmatpush2.bf16.msra.mxu0 0
        %1180 = vmatprep.subr.bf16.mxu0 0
        %1181 = vmatpush2.bf16.msra.mxu0 0
        %1182 = vmatprep.subr.bf16.mxu0 0
        %1183 = vmatpush2.bf16.msra.mxu0 0
        %1184 = vmatprep.subr.bf16.mxu0 0
        %1185 = vmatpush2.bf16.msra.mxu0 0
        %1186 = vmatprep.subr.bf16.mxu0 0
        %1187 = vmatpush2.bf16.msra.mxu0 0
        %1188 = vmatprep.subr.bf16.mxu0 0
        %1189 = vmatpush2.bf16.msra.mxu0 0
        %1190 = vmatprep.subr.bf16.mxu0 0
        %1191 = vmatpush2.bf16.msra.mxu0 0
        %1192 = vmatprep.subr.bf16.mxu0 0
        %1193 = vmatpush2.bf16.msra.mxu0 0
        %1194 = vmatprep.mubr.bf16.mxu0 0
        %1195 = vmatmul.mubr.bf16.gmra.mxu0 %v1160
        %v1196 = vpop.f32.mrf.mxu0
        %v1197 = vadd.f32 %v1145, %v1196
        %v1198 = vpop.f32.mrf.mxu0
        %v1199 = vpop.f32.mrf.mxu0
        %v1200 = vpop.f32.mrf.mxu0
        %1201 = vdwg.mxu0
        %v1202 = vpack.c.bf16 %v1197, %v1197
        %s1203 = scalar_lea.vmem %s3, 16
        %v1204 = vld [vmem:[%s1203] sm:$0xf]
        %v1205 = vld [vmem:[%s1203 + $0x4] sm:$0xf]
        %v1206 = vld [vmem:[%s1203 + $0x8] sm:$0xf]
        %v1207 = vld [vmem:[%s1203 + $0xc] sm:$0xf]
        %s1208 = scalar_lea.vmem %s10, 1
        %v1209 = vld [vmem:[%s1208] sm:$0x1]
        %v1211 = vlaneseq
        %v1212 = vshrl.u32 %v1211, 7
        %v1213 = vsub.s32 0, %v1212
        %v1214 = vrot.slane %v1209, %v1213
        %v1220 = vunpack.c.l.b16 %v1204
        %v1221 = vunpack.c.l.b16 %v1205
        %v1222 = vunpack.c.l.b16 %v1206
        %v1223 = vunpack.c.l.b16 %v1207
        %v1224 = vpack.c.b16 %v1221, %v1220
        %v1225 = vpack.c.b16 %v1223, %v1222
        %v1229 = vsel %vm540, %v1202, 0
        %1231 = vmatprep.subr.bf16.mxu0 0
        %1232 = vmatpush1.bf16.msra.mxu0 0
        %1233 = vmatprep.subr.bf16.mxu0 0
        %1234 = vmatpush1.bf16.msra.mxu0 0
        %1235 = vmatprep.subr.bf16.mxu0 0
        %1236 = vmatpush1.bf16.msra.mxu0 0
        %1237 = vmatprep.subr.bf16.mxu0 0
        %1238 = vmatpush1.bf16.msra.mxu0 0
        %1239 = vmatprep.subr.bf16.mxu0 0
        %1240 = vmatpush1.bf16.msra.mxu0 0
        %1241 = vmatprep.subr.bf16.mxu0 0
        %1242 = vmatpush1.bf16.msra.mxu0 0
        %1243 = vmatprep.subr.bf16.mxu0 0
        %1244 = vmatpush1.bf16.msra.mxu0 %v1225
        %1245 = vmatprep.subr.bf16.mxu0 0
        %1246 = vmatpush1.bf16.msra.mxu0 %v1224
        %1247 = vmatprep.subr.bf16.mxu0 0
        %1248 = vmatpush2.bf16.msra.mxu0 0
        %1249 = vmatprep.subr.bf16.mxu0 0
        %1250 = vmatpush2.bf16.msra.mxu0 0
        %1251 = vmatprep.subr.bf16.mxu0 0
        %1252 = vmatpush2.bf16.msra.mxu0 0
        %1253 = vmatprep.subr.bf16.mxu0 0
        %1254 = vmatpush2.bf16.msra.mxu0 0
        %1255 = vmatprep.subr.bf16.mxu0 0
        %1256 = vmatpush2.bf16.msra.mxu0 0
        %1257 = vmatprep.subr.bf16.mxu0 0
        %1258 = vmatpush2.bf16.msra.mxu0 0
        %1259 = vmatprep.subr.bf16.mxu0 0
        %1260 = vmatpush2.bf16.msra.mxu0 0
        %1261 = vmatprep.subr.bf16.mxu0 0
        %1262 = vmatpush2.bf16.msra.mxu0 0
        %1263 = vmatprep.mubr.bf16.mxu0 0
        %1264 = vmatmul.mubr.bf16.gmra.mxu0 %v1229
        %v1265 = vpop.f32.mrf.mxu0
        %v1266 = vadd.f32 %v1214, %v1265
        %v1267 = vpop.f32.mrf.mxu0
        %v1268 = vpop.f32.mrf.mxu0
        %v1269 = vpop.f32.mrf.mxu0
        %1270 = vdwg.mxu0
        %v1271 = vmul.f32 %v1266, 0.35355338
        %s1272 = scalar_lea.vmem %s4, 16
        %v1273 = vld [vmem:[%s1272] sm:$0xf]
        %v1274 = vld [vmem:[%s1272 + $0x4] sm:$0xf]
        %v1275 = vld [vmem:[%s1272 + $0x8] sm:$0xf]
        %v1276 = vld [vmem:[%s1272 + $0xc] sm:$0xf]
        %s1277 = scalar_lea.vmem %s8, 1
        %v1278 = vld [vmem:[%s1277] sm:$0x1]
        %v1280 = vlaneseq
        %v1281 = vshrl.u32 %v1280, 7
        %v1282 = vsub.s32 0, %v1281
        %v1283 = vrot.slane %v1278, %v1282
        %v1289 = vunpack.c.l.b16 %v1273
        %v1290 = vunpack.c.l.b16 %v1274
        %v1291 = vunpack.c.l.b16 %v1275
        %v1292 = vunpack.c.l.b16 %v1276
        %v1293 = vpack.c.b16 %v1290, %v1289
        %v1294 = vpack.c.b16 %v1292, %v1291
        %v1298 = vsel %vm540, %v516, 0
        %1300 = vmatprep.subr.bf16.mxu0 0
        %1301 = vmatpush1.bf16.msra.mxu0 0
        %1302 = vmatprep.subr.bf16.mxu0 0
        %1303 = vmatpush1.bf16.msra.mxu0 0
        %1304 = vmatprep.subr.bf16.mxu0 0
        %1305 = vmatpush1.bf16.msra.mxu0 0
        %1306 = vmatprep.subr.bf16.mxu0 0
        %1307 = vmatpush1.bf16.msra.mxu0 0
        %1308 = vmatprep.subr.bf16.mxu0 0
        %1309 = vmatpush1.bf16.msra.mxu0 0
        %1310 = vmatprep.subr.bf16.mxu0 0
        %1311 = vmatpush1.bf16.msra.mxu0 0
        %1312 = vmatprep.subr.bf16.mxu0 0
        %1313 = vmatpush1.bf16.msra.mxu0 %v1294
        %1314 = vmatprep.subr.bf16.mxu0 0
        %1315 = vmatpush1.bf16.msra.mxu0 %v1293
        %1316 = vmatprep.subr.bf16.mxu0 0
        %1317 = vmatpush2.bf16.msra.mxu0 0
        %1318 = vmatprep.subr.bf16.mxu0 0
        %1319 = vmatpush2.bf16.msra.mxu0 0
        %1320 = vmatprep.subr.bf16.mxu0 0
        %1321 = vmatpush2.bf16.msra.mxu0 0
        %1322 = vmatprep.subr.bf16.mxu0 0
        %1323 = vmatpush2.bf16.msra.mxu0 0
        %1324 = vmatprep.subr.bf16.mxu0 0
        %1325 = vmatpush2.bf16.msra.mxu0 0
        %1326 = vmatprep.subr.bf16.mxu0 0
        %1327 = vmatpush2.bf16.msra.mxu0 0
        %1328 = vmatprep.subr.bf16.mxu0 0
        %1329 = vmatpush2.bf16.msra.mxu0 0
        %1330 = vmatprep.subr.bf16.mxu0 0
        %1331 = vmatpush2.bf16.msra.mxu0 0
        %1332 = vmatprep.mubr.bf16.mxu0 0
        %1333 = vmatmul.mubr.bf16.gmra.mxu0 %v1298
        %v1334 = vpop.f32.mrf.mxu0
        %v1335 = vadd.f32 %v1283, %v1334
        %v1336 = vpop.f32.mrf.mxu0
        %v1337 = vpop.f32.mrf.mxu0
        %v1338 = vpop.f32.mrf.mxu0
        %1339 = vdwg.mxu0
        %v1340 = vpack.c.bf16 %v1271, %v1271
        %1342 = vrot.lane.b32.xlu0 %v1340, 120
        %v1343 = vpop.permute.xlu0 %1342
        %1344 = vrot.lane.b32.xlu0 %v1340, 112
        %v1345 = vpop.permute.xlu0 %1344
        %1346 = vrot.lane.b32.xlu0 %v1340, 104
        %v1347 = vpop.permute.xlu0 %1346
        %v1348 = vpack.c.bf16 %v1335, %v1335
        %1350 = vrot.lane.b32.xlu0 %v1348, 120
        %v1351 = vpop.permute.xlu0 %1350
        %1352 = vrot.lane.b32.xlu0 %v1348, 112
        %v1353 = vpop.permute.xlu0 %1352
        %1354 = vrot.lane.b32.xlu0 %v1348, 104
        %v1355 = vpop.permute.xlu0 %1354
        %v1357 = vsel %vm667, %v1340, 0
        %v1360 = vsel %vm667, %v1348, 0
        %1362 = vmatprep.subr.bf16.mxu0 0
        %1363 = vmatpush1.bf16.xpose.msra.mxu0 0
        %1364 = vmatprep.subr.bf16.mxu0 0
        %1365 = vmatpush1.bf16.xpose.msra.mxu0 0
        %1366 = vmatprep.subr.bf16.mxu0 0
        %1367 = vmatpush1.bf16.xpose.msra.mxu0 0
        %1368 = vmatprep.subr.bf16.mxu0 0
        %1369 = vmatpush1.bf16.xpose.msra.mxu0 0
        %1370 = vmatprep.subr.bf16.mxu0 0
        %1371 = vmatpush1.bf16.xpose.msra.mxu0 0
        %1372 = vmatprep.subr.bf16.mxu0 0
        %1373 = vmatpush1.bf16.xpose.msra.mxu0 0
        %1374 = vmatprep.subr.bf16.mxu0 0
        %1375 = vmatpush1.bf16.xpose.msra.mxu0 0
        %1376 = vmatprep.subr.bf16.mxu0 0
        %1377 = vmatpush1.bf16.xpose.msra.mxu0 %v1360
        %1378 = vmatprep.subr.bf16.mxu0 0
        %1379 = vmatpush2.bf16.xpose.msra.mxu0 0
        %1380 = vmatprep.subr.bf16.mxu0 0
        %1381 = vmatpush2.bf16.xpose.msra.mxu0 0
        %1382 = vmatprep.subr.bf16.mxu0 0
        %1383 = vmatpush2.bf16.xpose.msra.mxu0 0
        %1384 = vmatprep.subr.bf16.mxu0 0
        %1385 = vmatpush2.bf16.xpose.msra.mxu0 0
        %1386 = vmatprep.subr.bf16.mxu0 0
        %1387 = vmatpush2.bf16.xpose.msra.mxu0 0
        %1388 = vmatprep.subr.bf16.mxu0 0
        %1389 = vmatpush2.bf16.xpose.msra.mxu0 0
        %1390 = vmatprep.subr.bf16.mxu0 0
        %1391 = vmatpush2.bf16.xpose.msra.mxu0 0
        %1392 = vmatprep.subr.bf16.mxu0 0
        %1393 = vmatpush2.bf16.xpose.msra.mxu0 0
        %1394 = vmatprep.mubr.bf16.mxu0 0
        %1395 = vmatmul.mubr.bf16.gmra.mxu0 %v1357
        %v1396 = vpop.f32.mrf.mxu0
        %v1397 = vadd.f32 0.0, %v1396
        %v1398 = vpop.f32.mrf.mxu0
        %v1399 = vpop.f32.mrf.mxu0
        %v1400 = vpop.f32.mrf.mxu0
        %1401 = vdwg.mxu0
        %v1403 = vsel %vm667, %v1343, 0
        %v1406 = vsel %vm667, %v1351, 0
        %1408 = vmatprep.subr.bf16.mxu0 0
        %1409 = vmatpush1.bf16.xpose.msra.mxu0 0
        %1410 = vmatprep.subr.bf16.mxu0 0
        %1411 = vmatpush1.bf16.xpose.msra.mxu0 0
        %1412 = vmatprep.subr.bf16.mxu0 0
        %1413 = vmatpush1.bf16.xpose.msra.mxu0 0
        %1414 = vmatprep.subr.bf16.mxu0 0
        %1415 = vmatpush1.bf16.xpose.msra.mxu0 0
        %1416 = vmatprep.subr.bf16.mxu0 0
        %1417 = vmatpush1.bf16.xpose.msra.mxu0 0
        %1418 = vmatprep.subr.bf16.mxu0 0
        %1419 = vmatpush1.bf16.xpose.msra.mxu0 0
        %1420 = vmatprep.subr.bf16.mxu0 0
        %1421 = vmatpush1.bf16.xpose.msra.mxu0 0
        %1422 = vmatprep.subr.bf16.mxu0 0
        %1423 = vmatpush1.bf16.xpose.msra.mxu0 %v1406
        %1424 = vmatprep.subr.bf16.mxu0 0
        %1425 = vmatpush2.bf16.xpose.msra.mxu0 0
        %1426 = vmatprep.subr.bf16.mxu0 0
        %1427 = vmatpush2.bf16.xpose.msra.mxu0 0
        %1428 = vmatprep.subr.bf16.mxu0 0
        %1429 = vmatpush2.bf16.xpose.msra.mxu0 0
        %1430 = vmatprep.subr.bf16.mxu0 0
        %1431 = vmatpush2.bf16.xpose.msra.mxu0 0
        %1432 = vmatprep.subr.bf16.mxu0 0
        %1433 = vmatpush2.bf16.xpose.msra.mxu0 0
        %1434 = vmatprep.subr.bf16.mxu0 0
        %1435 = vmatpush2.bf16.xpose.msra.mxu0 0
        %1436 = vmatprep.subr.bf16.mxu0 0
        %1437 = vmatpush2.bf16.xpose.msra.mxu0 0
        %1438 = vmatprep.subr.bf16.mxu0 0
        %1439 = vmatpush2.bf16.xpose.msra.mxu0 0
        %1440 = vmatprep.mubr.bf16.mxu0 0
        %1441 = vmatmul.mubr.bf16.gmra.mxu0 %v1403
        %v1442 = vpop.f32.mrf.mxu0
        %v1443 = vadd.f32 0.0, %v1442
        %v1444 = vpop.f32.mrf.mxu0
        %v1445 = vpop.f32.mrf.mxu0
        %v1446 = vpop.f32.mrf.mxu0
        %1447 = vdwg.mxu0
        %v1449 = vsel %vm667, %v1345, 0
        %v1452 = vsel %vm667, %v1353, 0
        %1454 = vmatprep.subr.bf16.mxu0 0
        %1455 = vmatpush1.bf16.xpose.msra.mxu0 0
        %1456 = vmatprep.subr.bf16.mxu0 0
        %1457 = vmatpush1.bf16.xpose.msra.mxu0 0
        %1458 = vmatprep.subr.bf16.mxu0 0
        %1459 = vmatpush1.bf16.xpose.msra.mxu0 0
        %1460 = vmatprep.subr.bf16.mxu0 0
        %1461 = vmatpush1.bf16.xpose.msra.mxu0 0
        %1462 = vmatprep.subr.bf16.mxu0 0
        %1463 = vmatpush1.bf16.xpose.msra.mxu0 0
        %1464 = vmatprep.subr.bf16.mxu0 0
        %1465 = vmatpush1.bf16.xpose.msra.mxu0 0
        %1466 = vmatprep.subr.bf16.mxu0 0
        %1467 = vmatpush1.bf16.xpose.msra.mxu0 0
        %1468 = vmatprep.subr.bf16.mxu0 0
        %1469 = vmatpush1.bf16.xpose.msra.mxu0 %v1452
        %1470 = vmatprep.subr.bf16.mxu0 0
        %1471 = vmatpush2.bf16.xpose.msra.mxu0 0
        %1472 = vmatprep.subr.bf16.mxu0 0
        %1473 = vmatpush2.bf16.xpose.msra.mxu0 0
        %1474 = vmatprep.subr.bf16.mxu0 0
        %1475 = vmatpush2.bf16.xpose.msra.mxu0 0
        %1476 = vmatprep.subr.bf16.mxu0 0
        %1477 = vmatpush2.bf16.xpose.msra.mxu0 0
        %1478 = vmatprep.subr.bf16.mxu0 0
        %1479 = vmatpush2.bf16.xpose.msra.mxu0 0
        %1480 = vmatprep.subr.bf16.mxu0 0
        %1481 = vmatpush2.bf16.xpose.msra.mxu0 0
        %1482 = vmatprep.subr.bf16.mxu0 0
        %1483 = vmatpush2.bf16.xpose.msra.mxu0 0
        %1484 = vmatprep.subr.bf16.mxu0 0
        %1485 = vmatpush2.bf16.xpose.msra.mxu0 0
        %1486 = vmatprep.mubr.bf16.mxu0 0
        %1487 = vmatmul.mubr.bf16.gmra.mxu0 %v1449
        %v1488 = vpop.f32.mrf.mxu0
        %v1489 = vadd.f32 0.0, %v1488
        %v1490 = vpop.f32.mrf.mxu0
        %v1491 = vpop.f32.mrf.mxu0
        %v1492 = vpop.f32.mrf.mxu0
        %1493 = vdwg.mxu0
        %v1495 = vsel %vm667, %v1347, 0
        %v1498 = vsel %vm667, %v1355, 0
        %1500 = vmatprep.subr.bf16.mxu0 0
        %1501 = vmatpush1.bf16.xpose.msra.mxu0 0
        %1502 = vmatprep.subr.bf16.mxu0 0
        %1503 = vmatpush1.bf16.xpose.msra.mxu0 0
        %1504 = vmatprep.subr.bf16.mxu0 0
        %1505 = vmatpush1.bf16.xpose.msra.mxu0 0
        %1506 = vmatprep.subr.bf16.mxu0 0
        %1507 = vmatpush1.bf16.xpose.msra.mxu0 0
        %1508 = vmatprep.subr.bf16.mxu0 0
        %1509 = vmatpush1.bf16.xpose.msra.mxu0 0
        %1510 = vmatprep.subr.bf16.mxu0 0
        %1511 = vmatpush1.bf16.xpose.msra.mxu0 0
        %1512 = vmatprep.subr.bf16.mxu0 0
        %1513 = vmatpush1.bf16.xpose.msra.mxu0 0
        %1514 = vmatprep.subr.bf16.mxu0 0
        %1515 = vmatpush1.bf16.xpose.msra.mxu0 %v1498
        %1516 = vmatprep.subr.bf16.mxu0 0
        %1517 = vmatpush2.bf16.xpose.msra.mxu0 0
        %1518 = vmatprep.subr.bf16.mxu0 0
        %1519 = vmatpush2.bf16.xpose.msra.mxu0 0
        %1520 = vmatprep.subr.bf16.mxu0 0
        %1521 = vmatpush2.bf16.xpose.msra.mxu0 0
        %1522 = vmatprep.subr.bf16.mxu0 0
        %1523 = vmatpush2.bf16.xpose.msra.mxu0 0
        %1524 = vmatprep.subr.bf16.mxu0 0
        %1525 = vmatpush2.bf16.xpose.msra.mxu0 0
        %1526 = vmatprep.subr.bf16.mxu0 0
        %1527 = vmatpush2.bf16.xpose.msra.mxu0 0
        %1528 = vmatprep.subr.bf16.mxu0 0
        %1529 = vmatpush2.bf16.xpose.msra.mxu0 0
        %1530 = vmatprep.subr.bf16.mxu0 0
        %1531 = vmatpush2.bf16.xpose.msra.mxu0 0
        %1532 = vmatprep.mubr.bf16.mxu0 0
        %1533 = vmatmul.mubr.bf16.gmra.mxu0 %v1495
        %v1534 = vpop.f32.mrf.mxu0
        %v1535 = vadd.f32 0.0, %v1534
        %v1536 = vpop.f32.mrf.mxu0
        %v1537 = vpop.f32.mrf.mxu0
        %v1538 = vpop.f32.mrf.mxu0
        %1539 = vdwg.mxu0
        %v1540 = vsel %vm667, %v1397, -inf
        %1541 = vmax.xlane.f32.xlu0 %v1540
        %v1542 = vpop.xlane.xlu0 %1541
        %v1543 = vsel %vm667, %v1443, -inf
        %1544 = vmax.xlane.f32.xlu0 %v1543
        %v1545 = vpop.xlane.xlu0 %1544
        %v1546 = vsel %vm667, %v1489, -inf
        %1547 = vmax.xlane.f32.xlu0 %v1546
        %v1548 = vpop.xlane.xlu0 %1547
        %v1549 = vsel %vm667, %v1535, -inf
        %1550 = vmax.xlane.f32.xlu0 %v1549
        %v1551 = vpop.xlane.xlu0 %1550
        %v1552 = vsub.f32 -inf, %v1542
        %v1553 = vsub.f32 -inf, %v1545
        %v1554 = vsub.f32 -inf, %v1548
        %v1555 = vsub.f32 -inf, %v1551
        %v1556 = vmul.f32 %v1552, 1.442695
        %v1557 = vpow.pop %v1556
        %v1558 = vmul.f32 %v1553, 1.442695
        %v1559 = vpow.pop %v1558
        %v1560 = vmul.f32 %v1554, 1.442695
        %v1561 = vpow.pop %v1560
        %v1562 = vmul.f32 %v1555, 1.442695
        %v1563 = vpow.pop %v1562
        %v1564 = vsub.f32 %v1397, %v1542
        %v1565 = vsub.f32 %v1443, %v1545
        %v1566 = vsub.f32 %v1489, %v1548
        %v1567 = vsub.f32 %v1535, %v1551
        %v1568 = vmul.f32 %v1564, 1.442695
        %v1569 = vpow.pop %v1568
        %v1570 = vmul.f32 %v1565, 1.442695
        %v1571 = vpow.pop %v1570
        %v1572 = vmul.f32 %v1566, 1.442695
        %v1573 = vpow.pop %v1572
        %v1574 = vmul.f32 %v1567, 1.442695
        %v1575 = vpow.pop %v1574
        %v1576 = vmul.f32 %v1557, 0.0
        %v1577 = vmul.f32 %v1559, 0.0
        %v1578 = vmul.f32 %v1561, 0.0
        %v1579 = vmul.f32 %v1563, 0.0
        %v1580 = vsel %vm667, %v1569, 0.0
        %1581 = vadd.xlane.f32.xlu0 %v1580
        %v1582 = vpop.xlane.xlu0 %1581
        %v1583 = vsel %vm667, %v1571, 0.0
        %1584 = vadd.xlane.f32.xlu0 %v1583
        %v1585 = vpop.xlane.xlu0 %1584
        %v1586 = vsel %vm667, %v1573, 0.0
        %1587 = vadd.xlane.f32.xlu0 %v1586
        %v1588 = vpop.xlane.xlu0 %1587
        %v1589 = vsel %vm667, %v1575, 0.0
        %1590 = vadd.xlane.f32.xlu0 %v1589
        %v1591 = vpop.xlane.xlu0 %1590
        %v1592 = vadd.f32 %v1576, %v1582
        %v1593 = vadd.f32 %v1577, %v1585
        %v1594 = vadd.f32 %v1578, %v1588
        %v1595 = vadd.f32 %v1579, %v1591
        %v1596 = vpack.c.bf16 %v1569, %v1569
        %v1597 = vpack.c.bf16 %v1571, %v1571
        %v1598 = vpack.c.bf16 %v1573, %v1573
        %v1599 = vpack.c.bf16 %v1575, %v1575
        %1600 = vrot.lane.b32.xlu0 %v1348, 96
        %v1601 = vpop.permute.xlu0 %1600
        %v1603 = vsel %vm667, %v1596, 0
        %v1606 = vsel %vm917, %v1601, 0
        %1608 = vmatprep.subr.bf16.mxu0 0
        %1609 = vmatpush1.bf16.msra.mxu0 0
        %1610 = vmatprep.subr.bf16.mxu0 0
        %1611 = vmatpush1.bf16.msra.mxu0 0
        %1612 = vmatprep.subr.bf16.mxu0 0
        %1613 = vmatpush1.bf16.msra.mxu0 0
        %1614 = vmatprep.subr.bf16.mxu0 0
        %1615 = vmatpush1.bf16.msra.mxu0 0
        %1616 = vmatprep.subr.bf16.mxu0 0
        %1617 = vmatpush1.bf16.msra.mxu0 0
        %1618 = vmatprep.subr.bf16.mxu0 0
        %1619 = vmatpush1.bf16.msra.mxu0 0
        %1620 = vmatprep.subr.bf16.mxu0 0
        %1621 = vmatpush1.bf16.msra.mxu0 0
        %1622 = vmatprep.subr.bf16.mxu0 0
        %1623 = vmatpush1.bf16.msra.mxu0 %v1606
        %1624 = vmatprep.subr.bf16.mxu0 0
        %1625 = vmatpush2.bf16.msra.mxu0 0
        %1626 = vmatprep.subr.bf16.mxu0 0
        %1627 = vmatpush2.bf16.msra.mxu0 0
        %1628 = vmatprep.subr.bf16.mxu0 0
        %1629 = vmatpush2.bf16.msra.mxu0 0
        %1630 = vmatprep.subr.bf16.mxu0 0
        %1631 = vmatpush2.bf16.msra.mxu0 0
        %1632 = vmatprep.subr.bf16.mxu0 0
        %1633 = vmatpush2.bf16.msra.mxu0 0
        %1634 = vmatprep.subr.bf16.mxu0 0
        %1635 = vmatpush2.bf16.msra.mxu0 0
        %1636 = vmatprep.subr.bf16.mxu0 0
        %1637 = vmatpush2.bf16.msra.mxu0 0
        %1638 = vmatprep.subr.bf16.mxu0 0
        %1639 = vmatpush2.bf16.msra.mxu0 0
        %1640 = vmatprep.mubr.bf16.mxu0 0
        %1641 = vmatmul.mubr.bf16.gmra.mxu0 %v1603
        %v1642 = vpop.f32.mrf.mxu0
        %v1643 = vadd.f32 0.0, %v1642
        %v1644 = vpop.f32.mrf.mxu0
        %v1645 = vpop.f32.mrf.mxu0
        %v1646 = vpop.f32.mrf.mxu0
        %1647 = vdwg.mxu0
        %1648 = vrot.lane.b32.xlu0 %v1351, 96
        %v1649 = vpop.permute.xlu0 %1648
        %v1651 = vsel %vm667, %v1597, 0
        %v1654 = vsel %vm917, %v1649, 0
        %1656 = vmatprep.subr.bf16.mxu0 0
        %1657 = vmatpush1.bf16.msra.mxu0 0
        %1658 = vmatprep.subr.bf16.mxu0 0
        %1659 = vmatpush1.bf16.msra.mxu0 0
        %1660 = vmatprep.subr.bf16.mxu0 0
        %1661 = vmatpush1.bf16.msra.mxu0 0
        %1662 = vmatprep.subr.bf16.mxu0 0
        %1663 = vmatpush1.bf16.msra.mxu0 0
        %1664 = vmatprep.subr.bf16.mxu0 0
        %1665 = vmatpush1.bf16.msra.mxu0 0
        %1666 = vmatprep.subr.bf16.mxu0 0
        %1667 = vmatpush1.bf16.msra.mxu0 0
        %1668 = vmatprep.subr.bf16.mxu0 0
        %1669 = vmatpush1.bf16.msra.mxu0 0
        %1670 = vmatprep.subr.bf16.mxu0 0
        %1671 = vmatpush1.bf16.msra.mxu0 %v1654
        %1672 = vmatprep.subr.bf16.mxu0 0
        %1673 = vmatpush2.bf16.msra.mxu0 0
        %1674 = vmatprep.subr.bf16.mxu0 0
        %1675 = vmatpush2.bf16.msra.mxu0 0
        %1676 = vmatprep.subr.bf16.mxu0 0
        %1677 = vmatpush2.bf16.msra.mxu0 0
        %1678 = vmatprep.subr.bf16.mxu0 0
        %1679 = vmatpush2.bf16.msra.mxu0 0
        %1680 = vmatprep.subr.bf16.mxu0 0
        %1681 = vmatpush2.bf16.msra.mxu0 0
        %1682 = vmatprep.subr.bf16.mxu0 0
        %1683 = vmatpush2.bf16.msra.mxu0 0
        %1684 = vmatprep.subr.bf16.mxu0 0
        %1685 = vmatpush2.bf16.msra.mxu0 0
        %1686 = vmatprep.subr.bf16.mxu0 0
        %1687 = vmatpush2.bf16.msra.mxu0 0
        %1688 = vmatprep.mubr.bf16.mxu0 0
        %1689 = vmatmul.mubr.bf16.gmra.mxu0 %v1651
        %v1690 = vpop.f32.mrf.mxu0
        %v1691 = vadd.f32 0.0, %v1690
        %v1692 = vpop.f32.mrf.mxu0
        %v1693 = vpop.f32.mrf.mxu0
        %v1694 = vpop.f32.mrf.mxu0
        %1695 = vdwg.mxu0
        %1696 = vrot.lane.b32.xlu0 %v1353, 96
        %v1697 = vpop.permute.xlu0 %1696
        %v1699 = vsel %vm667, %v1598, 0
        %v1702 = vsel %vm917, %v1697, 0
        %1704 = vmatprep.subr.bf16.mxu0 0
        %1705 = vmatpush1.bf16.msra.mxu0 0
        %1706 = vmatprep.subr.bf16.mxu0 0
        %1707 = vmatpush1.bf16.msra.mxu0 0
        %1708 = vmatprep.subr.bf16.mxu0 0
        %1709 = vmatpush1.bf16.msra.mxu0 0
        %1710 = vmatprep.subr.bf16.mxu0 0
        %1711 = vmatpush1.bf16.msra.mxu0 0
        %1712 = vmatprep.subr.bf16.mxu0 0
        %1713 = vmatpush1.bf16.msra.mxu0 0
        %1714 = vmatprep.subr.bf16.mxu0 0
        %1715 = vmatpush1.bf16.msra.mxu0 0
        %1716 = vmatprep.subr.bf16.mxu0 0
        %1717 = vmatpush1.bf16.msra.mxu0 0
        %1718 = vmatprep.subr.bf16.mxu0 0
        %1719 = vmatpush1.bf16.msra.mxu0 %v1702
        %1720 = vmatprep.subr.bf16.mxu0 0
        %1721 = vmatpush2.bf16.msra.mxu0 0
        %1722 = vmatprep.subr.bf16.mxu0 0
        %1723 = vmatpush2.bf16.msra.mxu0 0
        %1724 = vmatprep.subr.bf16.mxu0 0
        %1725 = vmatpush2.bf16.msra.mxu0 0
        %1726 = vmatprep.subr.bf16.mxu0 0
        %1727 = vmatpush2.bf16.msra.mxu0 0
        %1728 = vmatprep.subr.bf16.mxu0 0
        %1729 = vmatpush2.bf16.msra.mxu0 0
        %1730 = vmatprep.subr.bf16.mxu0 0
        %1731 = vmatpush2.bf16.msra.mxu0 0
        %1732 = vmatprep.subr.bf16.mxu0 0
        %1733 = vmatpush2.bf16.msra.mxu0 0
        %1734 = vmatprep.subr.bf16.mxu0 0
        %1735 = vmatpush2.bf16.msra.mxu0 0
        %1736 = vmatprep.mubr.bf16.mxu0 0
        %1737 = vmatmul.mubr.bf16.gmra.mxu0 %v1699
        %v1738 = vpop.f32.mrf.mxu0
        %v1739 = vadd.f32 0.0, %v1738
        %v1740 = vpop.f32.mrf.mxu0
        %v1741 = vpop.f32.mrf.mxu0
        %v1742 = vpop.f32.mrf.mxu0
        %1743 = vdwg.mxu0
        %1744 = vrot.lane.b32.xlu0 %v1355, 96
        %v1745 = vpop.permute.xlu0 %1744
        %v1747 = vsel %vm667, %v1599, 0
        %v1750 = vsel %vm917, %v1745, 0
        %1752 = vmatprep.subr.bf16.mxu0 0
        %1753 = vmatpush1.bf16.msra.mxu0 0
        %1754 = vmatprep.subr.bf16.mxu0 0
        %1755 = vmatpush1.bf16.msra.mxu0 0
        %1756 = vmatprep.subr.bf16.mxu0 0
        %1757 = vmatpush1.bf16.msra.mxu0 0
        %1758 = vmatprep.subr.bf16.mxu0 0
        %1759 = vmatpush1.bf16.msra.mxu0 0
        %1760 = vmatprep.subr.bf16.mxu0 0
        %1761 = vmatpush1.bf16.msra.mxu0 0
        %1762 = vmatprep.subr.bf16.mxu0 0
        %1763 = vmatpush1.bf16.msra.mxu0 0
        %1764 = vmatprep.subr.bf16.mxu0 0
        %1765 = vmatpush1.bf16.msra.mxu0 0
        %1766 = vmatprep.subr.bf16.mxu0 0
        %1767 = vmatpush1.bf16.msra.mxu0 %v1750
        %1768 = vmatprep.subr.bf16.mxu0 0
        %1769 = vmatpush2.bf16.msra.mxu0 0
        %1770 = vmatprep.subr.bf16.mxu0 0
        %1771 = vmatpush2.bf16.msra.mxu0 0
        %1772 = vmatprep.subr.bf16.mxu0 0
        %1773 = vmatpush2.bf16.msra.mxu0 0
        %1774 = vmatprep.subr.bf16.mxu0 0
        %1775 = vmatpush2.bf16.msra.mxu0 0
        %1776 = vmatprep.subr.bf16.mxu0 0
        %1777 = vmatpush2.bf16.msra.mxu0 0
        %1778 = vmatprep.subr.bf16.mxu0 0
        %1779 = vmatpush2.bf16.msra.mxu0 0
        %1780 = vmatprep.subr.bf16.mxu0 0
        %1781 = vmatpush2.bf16.msra.mxu0 0
        %1782 = vmatprep.subr.bf16.mxu0 0
        %1783 = vmatpush2.bf16.msra.mxu0 0
        %1784 = vmatprep.mubr.bf16.mxu0 0
        %1785 = vmatmul.mubr.bf16.gmra.mxu0 %v1747
        %v1786 = vpop.f32.mrf.mxu0
        %v1787 = vadd.f32 0.0, %v1786
        %v1788 = vpop.f32.mrf.mxu0
        %v1789 = vpop.f32.mrf.mxu0
        %v1790 = vpop.f32.mrf.mxu0
        %1791 = vdwg.mxu0
        %v1792 = vadd.f32 %v1576, %v1643
        %v1793 = vadd.f32 %v1577, %v1691
        %v1794 = vadd.f32 %v1578, %v1739
        %v1795 = vadd.f32 %v1579, %v1787
        %v1796 = vrcp.pop %v1592
        %v1797 = vrcp.pop %v1593
        %v1798 = vrcp.pop %v1594
        %v1799 = vrcp.pop %v1595
        %v1800 = vmul.f32 %v1792, %v1796
        %v1801 = vmul.f32 %v1793, %v1797
        %v1802 = vmul.f32 %v1794, %v1798
        %v1803 = vmul.f32 %v1795, %v1799
        %1805 = vrot.lane.b32.xlu0 %v1801, 8
        %v1806 = vpop.permute.xlu0 %1805
        %1809 = vrot.lane.b32.xlu0 %v1802, 16
        %v1810 = vpop.permute.xlu0 %1809
        %1813 = vrot.lane.b32.xlu0 %v1803, 24
        %v1814 = vpop.permute.xlu0 %1813
        %v1816 = vsel %vm667, %v1800, %v1806
        %v1817 = vsel %vm1130, %v1816, %v1810
        %v1818 = vsel %vm1132, %v1817, %v1814
        %v1819 = vpack.c.bf16 %v1818, %v1818
        %s1820 = scalar_lea.vmem [#allocation7], 16
        %v1821 = vld [vmem:[%s1820] sm:$0xf]
        %v1822 = vld [vmem:[%s1820 + $0x4] sm:$0xf]
        %v1823 = vld [vmem:[%s1820 + $0x8] sm:$0xf]
        %v1824 = vld [vmem:[%s1820 + $0xc] sm:$0xf]
        %s1825 = scalar_lea.vmem %s10, 3
        %v1826 = vld [vmem:[%s1825] sm:$0x1]
        %v1828 = vlaneseq
        %v1829 = vshrl.u32 %v1828, 7
        %v1830 = vsub.s32 0, %v1829
        %v1831 = vrot.slane %v1826, %v1830
        %v1837 = vunpack.c.l.b16 %v1821
        %v1838 = vunpack.c.l.b16 %v1822
        %v1839 = vunpack.c.l.b16 %v1823
        %v1840 = vunpack.c.l.b16 %v1824
        %v1841 = vpack.c.b16 %v1838, %v1837
        %v1842 = vpack.c.b16 %v1840, %v1839
        %v1846 = vsel %vm540, %v1819, 0
        %1848 = vmatprep.subr.bf16.mxu0 0
        %1849 = vmatpush1.bf16.msra.mxu0 0
        %1850 = vmatprep.subr.bf16.mxu0 0
        %1851 = vmatpush1.bf16.msra.mxu0 0
        %1852 = vmatprep.subr.bf16.mxu0 0
        %1853 = vmatpush1.bf16.msra.mxu0 0
        %1854 = vmatprep.subr.bf16.mxu0 0
        %1855 = vmatpush1.bf16.msra.mxu0 0
        %1856 = vmatprep.subr.bf16.mxu0 0
        %1857 = vmatpush1.bf16.msra.mxu0 0
        %1858 = vmatprep.subr.bf16.mxu0 0
        %1859 = vmatpush1.bf16.msra.mxu0 0
        %1860 = vmatprep.subr.bf16.mxu0 0
        %1861 = vmatpush1.bf16.msra.mxu0 %v1842
        %1862 = vmatprep.subr.bf16.mxu0 0
        %1863 = vmatpush1.bf16.msra.mxu0 %v1841
        %1864 = vmatprep.subr.bf16.mxu0 0
        %1865 = vmatpush2.bf16.msra.mxu0 0
        %1866 = vmatprep.subr.bf16.mxu0 0
        %1867 = vmatpush2.bf16.msra.mxu0 0
        %1868 = vmatprep.subr.bf16.mxu0 0
        %1869 = vmatpush2.bf16.msra.mxu0 0
        %1870 = vmatprep.subr.bf16.mxu0 0
        %1871 = vmatpush2.bf16.msra.mxu0 0
        %1872 = vmatprep.subr.bf16.mxu0 0
        %1873 = vmatpush2.bf16.msra.mxu0 0
        %1874 = vmatprep.subr.bf16.mxu0 0
        %1875 = vmatpush2.bf16.msra.mxu0 0
        %1876 = vmatprep.subr.bf16.mxu0 0
        %1877 = vmatpush2.bf16.msra.mxu0 0
        %1878 = vmatprep.subr.bf16.mxu0 0
        %1879 = vmatpush2.bf16.msra.mxu0 0
        %1880 = vmatprep.mubr.bf16.mxu0 0
        %1881 = vmatmul.mubr.bf16.gmra.mxu0 %v1846
        %v1882 = vpop.f32.mrf.mxu0
        %v1883 = vadd.f32 %v1831, %v1882
        %v1884 = vpop.f32.mrf.mxu0
        %v1885 = vpop.f32.mrf.mxu0
        %v1886 = vpop.f32.mrf.mxu0
        %1887 = vdwg.mxu0
        %v1888 = vadd.f32 %v1197, %v1883
        %v1889 = vpack.c.bf16 %v1888, %v1888
        %v1890 = vld [vmem:[#allocation8] sm:$0xf]
        %v1891 = vld [vmem:[#allocation8 + $0x4] sm:$0xf]
        %v1892 = vld [vmem:[#allocation8 + $0x8] sm:$0xf]
        %v1893 = vld [vmem:[#allocation8 + $0xc] sm:$0xf]
        %v1894 = vld [vmem:[%s9] sm:$0x1]
        %v1896 = vlaneseq
        %v1897 = vshrl.u32 %v1896, 7
        %v1898 = vsub.s32 0, %v1897
        %v1899 = vrot.slane %v1894, %v1898
        %v1905 = vunpack.c.l.b16 %v1890
        %v1906 = vunpack.c.l.b16 %v1891
        %v1907 = vunpack.c.l.b16 %v1892
        %v1908 = vunpack.c.l.b16 %v1893
        %v1909 = vpack.c.b16 %v1906, %v1905
        %v1910 = vpack.c.b16 %v1908, %v1907
        %v1914 = vsel %vm540, %v1889, 0
        %1916 = vmatprep.subr.bf16.mxu0 0
        %1917 = vmatpush1.bf16.msra.mxu0 0
        %1918 = vmatprep.subr.bf16.mxu0 0
        %1919 = vmatpush1.bf16.msra.mxu0 0
        %1920 = vmatprep.subr.bf16.mxu0 0
        %1921 = vmatpush1.bf16.msra.mxu0 0
        %1922 = vmatprep.subr.bf16.mxu0 0
        %1923 = vmatpush1.bf16.msra.mxu0 0
        %1924 = vmatprep.subr.bf16.mxu0 0
        %1925 = vmatpush1.bf16.msra.mxu0 0
        %1926 = vmatprep.subr.bf16.mxu0 0
        %1927 = vmatpush1.bf16.msra.mxu0 0
        %1928 = vmatprep.subr.bf16.mxu0 0
        %1929 = vmatpush1.bf16.msra.mxu0 %v1910
        %1930 = vmatprep.subr.bf16.mxu0 0
        %1931 = vmatpush1.bf16.msra.mxu0 %v1909
        %1932 = vmatprep.subr.bf16.mxu0 0
        %1933 = vmatpush2.bf16.msra.mxu0 0
        %1934 = vmatprep.subr.bf16.mxu0 0
        %1935 = vmatpush2.bf16.msra.mxu0 0
        %1936 = vmatprep.subr.bf16.mxu0 0
        %1937 = vmatpush2.bf16.msra.mxu0 0
        %1938 = vmatprep.subr.bf16.mxu0 0
        %1939 = vmatpush2.bf16.msra.mxu0 0
        %1940 = vmatprep.subr.bf16.mxu0 0
        %1941 = vmatpush2.bf16.msra.mxu0 0
        %1942 = vmatprep.subr.bf16.mxu0 0
        %1943 = vmatpush2.bf16.msra.mxu0 0
        %1944 = vmatprep.subr.bf16.mxu0 0
        %1945 = vmatpush2.bf16.msra.mxu0 0
        %1946 = vmatprep.subr.bf16.mxu0 0
        %1947 = vmatpush2.bf16.msra.mxu0 0
        %1948 = vmatprep.mubr.bf16.mxu0 0
        %1949 = vmatmul.mubr.bf16.gmra.mxu0 %v1914
        %v1950 = vpop.f32.mrf.mxu0
        %v1951 = vadd.f32 %v1899, %v1950
        %v1952 = vpop.f32.mrf.mxu0
        %v1953 = vpop.f32.mrf.mxu0
        %v1954 = vpop.f32.mrf.mxu0
        %1955 = vdwg.mxu0
        %v1956 = vmax.f32 %v1951, 0.0
        %v1957 = vpack.c.bf16 %v1956, %v1956
        %v1958 = vld [vmem:[%s7] sm:$0xf]
        %v1959 = vld [vmem:[%s7 + $0x4] sm:$0xf]
        %v1960 = vld [vmem:[%s7 + $0x8] sm:$0xf]
        %v1961 = vld [vmem:[%s7 + $0xc] sm:$0xf]
        %v1962 = vld [vmem:[%s7 + $0x10] sm:$0xf]
        %v1963 = vld [vmem:[%s7 + $0x14] sm:$0xf]
        %v1964 = vld [vmem:[%s7 + $0x18] sm:$0xf]
        %v1965 = vld [vmem:[%s7 + $0x1c] sm:$0xf]
        %v1966 = vld [vmem:[%s7 + $0x20] sm:$0xf]
        %v1967 = vld [vmem:[%s7 + $0x24] sm:$0xf]
        %v1968 = vld [vmem:[%s7 + $0x28] sm:$0xf]
        %v1969 = vld [vmem:[%s7 + $0x2c] sm:$0xf]
        %v1970 = vld [vmem:[%s7 + $0x30] sm:$0xf]
        %v1971 = vld [vmem:[%s7 + $0x34] sm:$0xf]
        %v1972 = vld [vmem:[%s7 + $0x38] sm:$0xf]
        %v1973 = vld [vmem:[%s7 + $0x3c] sm:$0xf]
        %s1974 = scalar_lea.vmem %s10, 4
        %v1975 = vld [vmem:[%s1974] sm:$0x1]
        %v1977 = vlaneseq
        %v1978 = vshrl.u32 %v1977, 7
        %v1979 = vsub.s32 0, %v1978
        %v1980 = vrot.slane %v1975, %v1979
        %v1998 = vunpack.c.l.b16 %v1958
        %v1999 = vunpack.c.l.b16 %v1959
        %v2000 = vunpack.c.l.b16 %v1960
        %v2001 = vunpack.c.l.b16 %v1961
        %v2002 = vunpack.c.l.b16 %v1962
        %v2003 = vunpack.c.l.b16 %v1963
        %v2004 = vunpack.c.l.b16 %v1964
        %v2005 = vunpack.c.l.b16 %v1965
        %v2006 = vunpack.c.l.b16 %v1966
        %v2007 = vunpack.c.l.b16 %v1967
        %v2008 = vunpack.c.l.b16 %v1968
        %v2009 = vunpack.c.l.b16 %v1969
        %v2010 = vunpack.c.l.b16 %v1970
        %v2011 = vunpack.c.l.b16 %v1971
        %v2012 = vunpack.c.l.b16 %v1972
        %v2013 = vunpack.c.l.b16 %v1973
        %v2014 = vpack.c.b16 %v1999, %v1998
        %v2015 = vpack.c.b16 %v2001, %v2000
        %v2016 = vpack.c.b16 %v2003, %v2002
        %v2017 = vpack.c.b16 %v2005, %v2004
        %v2018 = vpack.c.b16 %v2007, %v2006
        %v2019 = vpack.c.b16 %v2009, %v2008
        %v2020 = vpack.c.b16 %v2011, %v2010
        %v2021 = vpack.c.b16 %v2013, %v2012
        %2030 = vmatprep.subr.bf16.mxu0 0
        %2031 = vmatpush1.bf16.msra.mxu0 %v2021
        %2032 = vmatprep.subr.bf16.mxu0 0
        %2033 = vmatpush1.bf16.msra.mxu0 %v2020
        %2034 = vmatprep.subr.bf16.mxu0 0
        %2035 = vmatpush1.bf16.msra.mxu0 %v2019
        %2036 = vmatprep.subr.bf16.mxu0 0
        %2037 = vmatpush1.bf16.msra.mxu0 %v2018
        %2038 = vmatprep.subr.bf16.mxu0 0
        %2039 = vmatpush1.bf16.msra.mxu0 %v2017
        %2040 = vmatprep.subr.bf16.mxu0 0
        %2041 = vmatpush1.bf16.msra.mxu0 %v2016
        %2042 = vmatprep.subr.bf16.mxu0 0
        %2043 = vmatpush1.bf16.msra.mxu0 %v2015
        %2044 = vmatprep.subr.bf16.mxu0 0
        %2045 = vmatpush1.bf16.msra.mxu0 %v2014
        %2046 = vmatprep.subr.bf16.mxu0 0
        %2047 = vmatpush2.bf16.msra.mxu0 0
        %2048 = vmatprep.subr.bf16.mxu0 0
        %2049 = vmatpush2.bf16.msra.mxu0 0
        %2050 = vmatprep.subr.bf16.mxu0 0
        %2051 = vmatpush2.bf16.msra.mxu0 0
        %2052 = vmatprep.subr.bf16.mxu0 0
        %2053 = vmatpush2.bf16.msra.mxu0 0
        %2054 = vmatprep.subr.bf16.mxu0 0
        %2055 = vmatpush2.bf16.msra.mxu0 0
        %2056 = vmatprep.subr.bf16.mxu0 0
        %2057 = vmatpush2.bf16.msra.mxu0 0
        %2058 = vmatprep.subr.bf16.mxu0 0
        %2059 = vmatpush2.bf16.msra.mxu0 0
        %2060 = vmatprep.subr.bf16.mxu0 0
        %2061 = vmatpush2.bf16.msra.mxu0 0
        %2062 = vmatprep.mubr.bf16.mxu0 0
        %2063 = vmatmul.mubr.bf16.gmra.mxu0 %v1957
        %v2064 = vpop.f32.mrf.mxu0
        %v2065 = vadd.f32 %v1980, %v2064
        %v2066 = vpop.f32.mrf.mxu0
        %v2067 = vpop.f32.mrf.mxu0
        %v2068 = vpop.f32.mrf.mxu0
        %2069 = vdwg.mxu0
        %v2070 = vadd.f32 %v2065, %v2065
        %v2071 = vsel %vm540, %v2070, 0.0
        %2072 = vadd.xlane.f32.xlu0 %v2071
        %v2073 = vpop.xlane.xlu0 %2072
        %v2074 = vrcp.pop 32.0
        %v2075 = vmul.f32 %v2073, %v2074
        %v2076 = vsub.f32 %v2070, %v2075
        %v2077 = vmul.f32 %v2076, %v2076
        %v2078 = vsel %vm540, %v2077, 0.0
        %2079 = vadd.xlane.f32.xlu0 %v2078
        %v2080 = vpop.xlane.xlu0 %2079
        %v2081 = vmul.f32 %v2080, %v2074
        %v2082 = vadd.f32 %v2081, 1e-05
        %v2083 = vrsqrt.pop %v2082
        %v2084 = vmul.f32 %v2076, %v2083
        %s2085 = scalar_lea.vmem %s10, 5
        %v2086 = vld [vmem:[%s2085] sm:$0x1]
        %v2088 = vlaneseq
        %v2089 = vshrl.u32 %v2088, 7
        %v2090 = vsub.s32 0, %v2089
        %v2091 = vrot.slane %v2086, %v2090
        %v2093 = vmul.f32 %v2084, %v2091
        %s2094 = scalar_lea.vmem %s10, 6
        %v2095 = vld [vmem:[%s2094] sm:$0x1]
        %v2097 = vlaneseq
        %v2098 = vshrl.u32 %v2097, 7
        %v2099 = vsub.s32 0, %v2098
        %v2100 = vrot.slane %v2095, %v2099
        %v2102 = vadd.f32 %v2093, %v2100
        %2103 = vst.msk [vmem:[%s502] sm:$0xff] %vm540, %v2102
        %s2104 = sand.u32 %s302, 1
        %s2105 = scalar_lea.sflag [#allocation4], %s2104
        %s2106 = sand.u32 %s302, 1
        %s2107 = smul.addr %s2106, 8
        %s2108 = scalar_lea.vmem [#allocation10], %s2107
        // Predicated region
        $region81: #{tpu_custom_call.1} parent=63 // pred_check
          %p2109 = pneg %p312
        $region82: #{tpu_custom_call.1} parent=63 // pred_check_branch
          %2111 = sbr.rel (%p2109) target = $region84
        $region83: #{tpu_custom_call.1} parent=63 // pred_region
          %s2113 = ssub.s32 128, 128
          %2114 = vsyncadd %s2105, %s2113
          %s2115 = sadd.s32 %s37, %s36
          %s2116 = smul.addr %s2115, 128
          %s2117 = scalar_lea.hbm %s11, %s2116
          %s2119 = sshll.u32 %s2108, 4
          %s2120 = int_to_ptr.vmem [resolvable:$true] %s2119
          %2122 = dma.vmem_to_hbm [thread:$0]  %s2120, 128, %s2117, %s2105
        $region84: #{tpu_custom_call.1} parent=63 // pred_fallthru
          _
      $region64: #{tpu_custom_call.1} parent=5 // pred_fallthru
        _
      %p2123 = scmp.le.s32.totalorder 2, %s27
      // Predicated region
      $region85: #{tpu_custom_call.1} parent=5 // pred_check
        %p2124 = pneg %p2123
      $region86: #{tpu_custom_call.1} parent=5 // pred_check_branch
        %2126 = sbr.rel (%p2124) target = $region88
      $region87: #{tpu_custom_call.1} parent=5 // pred_region
        %s2127 = ssub.s32 %s27, 2
        // Predicated region
        $region89: #{tpu_custom_call.1} parent=87 // pred_check
          %p2128 = pneg %p318
        $region90: #{tpu_custom_call.1} parent=87 // pred_check_branch
          %2130 = sbr.rel (%p2128) target = $region92
        $region91: #{tpu_custom_call.1} parent=87 // pred_region
          %s2131 = sand.u32 %s303, 1
          %s2132 = scalar_lea.sflag [#allocation4], %s2131
          %s2133 = sand.u32 %s303, 1
          %s2134 = smul.addr %s2133, 8
          %s2135 = scalar_lea.vmem [#allocation10], %s2134
          %2136 = dma.done %s2132, 128
        $region92: #{tpu_custom_call.1} parent=87 // pred_fallthru
          _
      $region88: #{tpu_custom_call.1} parent=5 // pred_fallthru
        _
    $region6: #{tpu_custom_call.1} parent=1 // loop_footer
      %s31 = sadd.s32 1, %s27
    $region7: #{tpu_custom_call.1} parent=1 // loop_footer_branch
      %26 = sbr.rel target = $region3
    $region8: #{tpu_custom_call.1} parent=1 // loop_exit
      _
    %2137 = vsyncpa [#allocation3], 1
    %s2138 = scalar_lea.sflag [#allocation3], 1
    %2139 = vsyncpa %s2138, 1
    %2140 = vsyncpa [#allocation6], 1
    %s2141 = scalar_lea.sflag [#allocation6], 1
    %2142 = vsyncpa %s2141, 1
    %2143 = vsyncpa [#allocation9], 1
    %2144 = vsyncpa [#allocation4], 1
    %s2145 = scalar_lea.sflag [#allocation4], 1
    %2146 = vsyncpa %s2145, 1

</llo_original>
